<compile_context>
chip_gen: v5e
topology: v5e:2x2
jax: 0.10.0
libtpu: 0.0.40
codegen_flags: <defaults>
</compile_context>

<pallas_src>
import jax
import jax.numpy as jnp
from jax import lax
from jax.experimental import pallas as pl
from jax.experimental.pallas import tpu as pltpu

# ----------------------------- small config ---------------------------------
BATCH = 2
EMBED_DIM = 32          # config.embed_dim
OBS_LEN = 32            # config.observation_length (== embed_dim, see note below)
NUM_HEADS = 4           # config.encoder_attn_heads
FF_EXPANSION = 2        # config.encoder_ff_expansion
HEAD_DIM = EMBED_DIM // NUM_HEADS
FF_DIM = EMBED_DIM * FF_EXPANSION
OUT_PAD = 128           # lane-dense output width (E=32 padded to full 128 lanes)


# ------------------------- positional encoding ------------------------------
def positional_encoding_table(length, dim):
    pos = jnp.arange(length, dtype=jnp.float32)[:, None]
    i = jnp.arange(dim, dtype=jnp.float32)[None, :]
    rates = jnp.power(10000.0, -(2.0 * jnp.floor(i / 2.0)) / dim)
    angles = pos * rates
    even = (jnp.arange(dim) % 2) == 0
    return jnp.where(even[None, :], jnp.sin(angles), jnp.cos(angles)).astype(jnp.float32)


# ------------------------------- Pallas kernel ------------------------------
def encoder_block_kernel(tokens_ref, vmask_ref, wqkv_ref, bqkv_ref,
                         wo_ref, bo_ref, w1_ref, b1_ref, w2_ref, b2_ref, out_ref):
    B, E, H, D = BATCH, EMBED_DIM, NUM_HEADS, HEAD_DIM
    L = OBS_LEN                                  # tokens per attention pass (T == E)

    # ---- fused QKV projection for both passes (bf16 operands, f32 accumulate)
    # tokens: rows 0..B*L-1 = temporal (pos-encoded, time-major) tokens,
    #         rows B*L..2B*L-1 = spatial (raw, channel-major) tokens.
    qkv = jnp.dot(tokens_ref[...], wqkv_ref[...],
                  preferred_element_type=jnp.float32) + bqkv_ref[...]    # (2B*L, 3E)

    qk_bf = qkv[:, :2 * E].astype(jnp.bfloat16)                          # (2B*L, 2E)

    # ---- per-head scores + softmax; heads stay on the lane axis --------------
    # (1/sqrt(D) is already folded into the Q columns of wqkv/bqkv.)
    attn_sum = None
    attn_parts = []                               # temporal-pass attn, per head
    for h in range(H):
        q_h = qk_bf[:, h * D:(h + 1) * D].reshape(2 * B, L, D)
        k_h = qk_bf[:, E + h * D:E + (h + 1) * D].reshape(2 * B, L, D)
        s_h = jnp.einsum('bld,bmd->blm', q_h, k_h,
                         preferred_element_type=jnp.float32)             # (2B, L, L) f32
        s_h = s_h - jnp.max(s_h, axis=-1, keepdims=True)
        e_h = jnp.exp(s_h)
        a_h = e_h * pl.reciprocal(jnp.sum(e_h, axis=-1, keepdims=True), approx=True)
        attn_sum = a_h if attn_sum is None else attn_sum + a_h
        attn_parts.append(a_h[:B])                # only temporal pass needs context

    attn_avg = attn_sum * (1.0 / H)               # head-averaged attention (2B, L, L)
    temporal_attn = attn_avg[:B]                  # (B, T, T)
    spatial_attn = attn_avg[B:]                   # (B, E, E)

    # ---- context: ONE lane-dense batched matmul ------------------------------
    # a_wide[b, i, h*L + j] = attn_h[b, i, j]          (lane-concatenated heads)
    # v_stk [b, h*L + j, e] = v[b, j, e] * (e // D == h)  (tiled + block-masked V)
    # => ctx[b, i, e] = sum_j attn_{e//D}[b, i, j] * v[b, j, e]   (standard MHA ctx)
    a_wide = jnp.concatenate(attn_parts, axis=-1).astype(jnp.bfloat16)   # (B, L, H*L)
    v_b = qkv[:B * L, 2 * E:].astype(jnp.bfloat16).reshape(B, L, E)
    v_stk = jnp.concatenate([v_b] * H, axis=1) * vmask_ref[...]          # (B, H*L, E)
    ctx = jnp.einsum('blm,bme->ble', a_wide, v_stk,
                     preferred_element_type=jnp.float32)                 # (B, L, E) f32

    enc = jnp.dot(ctx.reshape(B * L, E).astype(jnp.bfloat16), wo_ref[...],
                  preferred_element_type=jnp.float32) + bo_ref[...]
    enc_tm = enc.reshape(B, L, E)                 # time-major attention output

    # ---- spatial-temporal composition (tiny, kept f32) ------------------------
    # st^T = temporal_attn @ spatial_attn^T ; pre = st^T @ enc_tm
    st_t = jnp.einsum('btj,bij->bti', temporal_attn, spatial_attn,
                      preferred_element_type=jnp.float32)                # (B, T, E)
    pre = jnp.einsum('btj,bje->bte', st_t, enc_tm,
                     preferred_element_type=jnp.float32).reshape(B * L, E)

    # ---- feed-forward block (w2/b2 zero-padded to 128 output lanes) ----------
    h1 = jnp.maximum(jnp.dot(pre.astype(jnp.bfloat16), w1_ref[...],
                             preferred_element_type=jnp.float32) + b1_ref[...], 0.0)
    y = jnp.dot(h1.astype(jnp.bfloat16), w2_ref[...],
                preferred_element_type=jnp.float32) + b2_ref[...]        # (B*L, 128)

    out_ref[...] = y                              # lane-dense, unmasked store


@jax.jit
def encoder_block_forward(x, pe, params):
    B, E, T = x.shape
    assert T == E, "EncoderBlock composition requires observation_length == embed_dim"
    F = params["w1"].shape[1]
    H, D = NUM_HEADS, HEAD_DIM
    scale = 1.0 / (D ** 0.5)

    # ---- token staging in XLA (transpose / +PE / concat / flatten / bf16) ----
    x_tm = jnp.transpose(x, (0, 2, 1))                        # (B, T, E) time-major
    tokens = jnp.concatenate([x_tm + pe, x], axis=0)          # (2B, L, E): temporal | spatial
    tokens = tokens.reshape(2 * B * T, E).astype(jnp.bfloat16)

    # ---- weight prep: fused QKV (scale folded into Q), bf16, padded w2/b2 ----
    wqkv = jnp.concatenate([params["wq"] * scale, params["wk"], params["wv"]],
                           axis=1).astype(jnp.bfloat16)       # (E, 3E)
    bqkv = jnp.concatenate([params["bq"] * scale, params["bk"], params["bv"]],
                           axis=1)                            # (1, 3E) f32
    wo = params["wo"].astype(jnp.bfloat16)
    w1 = params["w1"].astype(jnp.bfloat16)
    w2p = jnp.zeros((F, OUT_PAD), jnp.float32).at[:, :E].set(params["w2"]).astype(jnp.bfloat16)
    b2p = jnp.zeros((1, OUT_PAD), jnp.float32).at[:, :E].set(params["b2"])

    # static block mask: V_stk row m = h*L + j keeps only the output columns of head h
    vmask = ((jnp.arange(H * T)[:, None] // T) ==
             (jnp.arange(E)[None, :] // D)).astype(jnp.bfloat16)   # (H*L, E)

    def full(shape):  # whole (tiny) array resident for the single grid step
        return pl.BlockSpec(shape, lambda i: (0,) * len(shape))

    out_slab = pl.pallas_call(
        encoder_block_kernel,
        out_shape=jax.ShapeDtypeStruct((B * T, OUT_PAD), jnp.float32),
        grid=(1,),
        in_specs=[
            full((2 * B * T, E)),                    # pre-staged tokens (bf16)
            full((H * T, E)),                        # static V block mask (bf16)
            full((E, 3 * E)), full((1, 3 * E)),      # fused Wqkv (bf16), bqkv (f32)
            full((E, E)), full((1, E)),              # Wo (bf16), bo (f32)
            full((E, F)), full((1, F)),              # W1 (bf16), b1 (f32)
            full((F, OUT_PAD)), full((1, OUT_PAD)),  # padded W2 (bf16), b2 (f32)
        ],
        out_specs=full((B * T, OUT_PAD)),
        compiler_params=pltpu.CompilerParams(dimension_semantics=("arbitrary",)),
    )(tokens, vmask, wqkv, bqkv, wo, params["bo"], w1, params["b1"], w2p, b2p)

    # Layout plumbing back to the module's channel-first (B, E, T) output.
    return jnp.transpose(out_slab[:, :E].reshape(B, T, E), (0, 2, 1))


# ------------------- independent literal reference (no fusion, f32) ----------
def _mha_reference(tokens, params, precision):
    """Literal per-head MHA on token-major input (B, L, E)."""
    H, D = NUM_HEADS, HEAD_DIM
    q = jnp.matmul(tokens, params["wq"], precision=precision) + params["bq"]
    k = jnp.matmul(tokens, params["wk"], precision=precision) + params["bk"]
    v = jnp.matmul(tokens, params["wv"], precision=precision) + params["bv"]
    scale = 1.0 / (D ** 0.5)
    ctx_heads, attn_heads = [], []
    for h in range(H):
        sl = slice(h * D, (h + 1) * D)
        qh, kh, vh = q[..., sl], k[..., sl], v[..., sl]
        s = jnp.matmul(qh, jnp.swapaxes(kh, -1, -2), precision=precision) * scale
        s = s - jnp.max(s, axis=-1, keepdims=True)
        e = jnp.exp(s)
        a = e / jnp.sum(e, axis=-1, keepdims=True)
        attn_heads.append(a)
        ctx_heads.append(jnp.matmul(a, vh, precision=precision))
    ctx = jnp.concatenate(ctx_heads, axis=-1)
    out = jnp.matmul(ctx, params["wo"], precision=precision) + params["bo"]
    attn_avg = sum(attn_heads) / H
    return out, attn_avg


def encoder_block_reference(x, pe, params, precision):
    """Op-by-op translation of EncoderBlock.forward (channel-first x: (B,E,T))."""
    hs_tm = jnp.swapaxes(x, 1, 2)                              # hidden_states.transpose(1,2)
    pos_tokens = hs_tm + pe                                    # (B, T, E)
    enc_tokens, temporal_attn = _mha_reference(pos_tokens, params, precision)
    enc_cf = jnp.swapaxes(enc_tokens, 1, 2)                    # module returns channel-first
    _, spatial_attn = _mha_reference(x, params, precision)     # tokens over channels (T == E)
    st = jnp.matmul(spatial_attn, jnp.swapaxes(temporal_attn, 1, 2), precision=precision)
    enc = jnp.matmul(jnp.swapaxes(st, 1, 2), jnp.swapaxes(enc_cf, 1, 2), precision=precision)
    h1 = jnp.maximum(jnp.matmul(enc, params["w1"], precision=precision) + params["b1"], 0.0)
    y = jnp.matmul(h1, params["w2"], precision=precision) + params["b2"]
    return jnp.swapaxes(y, 1, 2)                               # (B, E, T)


# --------------------------------- main --------------------------------------
if __name__ == "__main__":
    key = jax.random.PRNGKey(0)
    keys = jax.random.split(key, 13)

    def w(k, shape, scale=0.1):
        return scale * jax.random.normal(k, shape, dtype=jnp.float32)

    params = {
        "wq": w(keys[0], (EMBED_DIM, EMBED_DIM)), "bq": w(keys[1], (1, EMBED_DIM), 0.01),
        "wk": w(keys[2], (EMBED_DIM, EMBED_DIM)), "bk": w(keys[3], (1, EMBED_DIM), 0.01),
        "wv": w(keys[4], (EMBED_DIM, EMBED_DIM)), "bv": w(keys[5], (1, EMBED_DIM), 0.01),
        "wo": w(keys[6], (EMBED_DIM, EMBED_DIM)), "bo": w(keys[7], (1, EMBED_DIM), 0.01),
        "w1": w(keys[8], (EMBED_DIM, FF_DIM)),    "b1": w(keys[9], (1, FF_DIM), 0.01),
        "w2": w(keys[10], (FF_DIM, EMBED_DIM)),   "b2": w(keys[11], (1, EMBED_DIM), 0.01),
    }
    pe = positional_encoding_table(OBS_LEN, EMBED_DIM)

    # hidden_states: (B, embed_dim, observation_length), channel-first like PyTorch.
    x = jax.random.normal(keys[12], (BATCH, EMBED_DIM, OBS_LEN), dtype=jnp.float32)

    out = jax.block_until_ready(encoder_block_forward(x, pe, params))
    assert out.shape == (BATCH, EMBED_DIM, OBS_LEN)

    # bf16-operand kernel vs. true-f32 literal reference: bf16-appropriate tolerance.
    ref = jax.block_until_ready(
        encoder_block_reference(x, pe, params, lax.Precision.HIGHEST))
    max_diff = float(jnp.max(jnp.abs(out - ref)))
    assert bool(jnp.allclose(out, ref, rtol=3e-2, atol=3e-2)), (
        "max abs diff vs f32 reference %e" % max_diff)

    print("KERNEL_OK")
</pallas_src>

<mosaic_0001>
module attributes {stable_mosaic.version = 11 : i64} {
  func.func @encoder_block_kernel(%arg0: i32, %arg1: memref<128x32xbf16, #tpu.memory_space<vmem>>, %arg2: memref<128x32xbf16, #tpu.memory_space<vmem>>, %arg3: memref<32x96xbf16, #tpu.memory_space<vmem>>, %arg4: memref<1x96xf32, #tpu.memory_space<vmem>>, %arg5: memref<32x32xbf16, #tpu.memory_space<vmem>>, %arg6: memref<1x32xf32, #tpu.memory_space<vmem>>, %arg7: memref<32x64xbf16, #tpu.memory_space<vmem>>, %arg8: memref<1x64xf32, #tpu.memory_space<vmem>>, %arg9: memref<64x128xbf16, #tpu.memory_space<vmem>>, %arg10: memref<1x128xf32, #tpu.memory_space<vmem>>, %arg11: memref<64x128xf32, #tpu.memory_space<vmem>>) attributes {dimension_semantics = [#tpu.dimension_semantics<arbitrary>], iteration_bounds = array<i64: 1>, scalar_prefetch = 0 : i64, scratch_operands = 0 : i64, tpu.core_type = #tpu.core_type<tc>, window_params = [{pipeline_mode = #tpu.pipeline_mode<synchronous>, transform_indices = @transform_0, window_bounds = array<i64: 128, 32>}, {pipeline_mode = #tpu.pipeline_mode<synchronous>, transform_indices = @transform_1, window_bounds = array<i64: 128, 32>}, {pipeline_mode = #tpu.pipeline_mode<synchronous>, transform_indices = @transform_2, window_bounds = array<i64: 32, 96>}, {pipeline_mode = #tpu.pipeline_mode<synchronous>, transform_indices = @transform_3, window_bounds = array<i64: 1, 96>}, {pipeline_mode = #tpu.pipeline_mode<synchronous>, transform_indices = @transform_4, window_bounds = array<i64: 32, 32>}, {pipeline_mode = #tpu.pipeline_mode<synchronous>, transform_indices = @transform_5, window_bounds = array<i64: 1, 32>}, {pipeline_mode = #tpu.pipeline_mode<synchronous>, transform_indices = @transform_6, window_bounds = array<i64: 32, 64>}, {pipeline_mode = #tpu.pipeline_mode<synchronous>, transform_indices = @transform_7, window_bounds = array<i64: 1, 64>}, {pipeline_mode = #tpu.pipeline_mode<synchronous>, transform_indices = @transform_8, window_bounds = array<i64: 64, 128>}, {pipeline_mode = #tpu.pipeline_mode<synchronous>, transform_indices = @transform_9, window_bounds = array<i64: 1, 128>}, {pipeline_mode = #tpu.pipeline_mode<synchronous>, transform_indices = @transform_10, window_bounds = array<i64: 64, 128>}]} {
    %c0 = arith.constant 0 : index
    %c0_0 = arith.constant 0 : index
    %0 = vector.load %arg1[%c0, %c0_0] : memref<128x32xbf16, #tpu.memory_space<vmem>>, vector<128x32xbf16>
    %c0_1 = arith.constant 0 : index
    %c0_2 = arith.constant 0 : index
    %1 = vector.load %arg3[%c0_1, %c0_2] : memref<32x96xbf16, #tpu.memory_space<vmem>>, vector<32x96xbf16>
    %cst = arith.constant dense<0.000000e+00> : vector<128x96xf32>
    %2 = tpu.matmul %0, %1, %cst {dimension_numbers = #tpu.dot_dimension_numbers<[1], [0], [0], [1], [0, 0, 1, 1], [], []>} : vector<128x32xbf16>, vector<32x96xbf16>, vector<128x96xf32> -> vector<128x96xf32>
    %c0_3 = arith.constant 0 : index
    %c0_4 = arith.constant 0 : index
    %3 = vector.load %arg4[%c0_3, %c0_4] : memref<1x96xf32, #tpu.memory_space<vmem>>, vector<1x96xf32>
    %4 = vector.broadcast %3 : vector<1x96xf32> to vector<128x96xf32>
    %5 = arith.addf %2, %4 : vector<128x96xf32>
    %6 = vector.extract_strided_slice %5 {offsets = [0, 0], sizes = [128, 64], strides = [1, 1]} : vector<128x96xf32> to vector<128x64xf32>
    %7 = arith.truncf %6 : vector<128x64xf32> to vector<128x64xbf16>
    %8 = vector.extract_strided_slice %7 {offsets = [0, 0], sizes = [128, 8], strides = [1, 1]} : vector<128x64xbf16> to vector<128x8xbf16>
    %9 = vector.shape_cast %8 : vector<128x8xbf16> to vector<4x32x8xbf16>
    %10 = vector.extract_strided_slice %7 {offsets = [0, 32], sizes = [128, 8], strides = [1, 1]} : vector<128x64xbf16> to vector<128x8xbf16>
    %11 = vector.shape_cast %10 : vector<128x8xbf16> to vector<4x32x8xbf16>
    "tpu.trace_start"() <{level = 10 : i32, message = "bld,bmd->blm"}> : () -> ()
    %cst_5 = arith.constant dense<0.000000e+00> : vector<4x32x32xf32>
    %12 = tpu.matmul %9, %11, %cst_5 {dimension_numbers = #tpu.dot_dimension_numbers<[2], [2], [1], [1], [0, 0, 0, 1, 1, 1], [0], [0]>} : vector<4x32x8xbf16>, vector<4x32x8xbf16>, vector<4x32x32xf32> -> vector<4x32x32xf32>
    "tpu.trace_stop"() : () -> ()
    %cst_6 = arith.constant dense<0xFF800000> : vector<4x32xf32>
    %13 = vector.multi_reduction <maximumf>, %12, %cst_6 [2] : vector<4x32x32xf32> to vector<4x32xf32>
    %14 = vector.shape_cast %13 : vector<4x32xf32> to vector<4x32x1xf32>
    %15 = vector.broadcast %14 : vector<4x32x1xf32> to vector<4x32x32xf32>
    %16 = arith.subf %12, %15 : vector<4x32x32xf32>
    %17 = math.exp %16 : vector<4x32x32xf32>
    %cst_7 = arith.constant dense<0.000000e+00> : vector<4x32xf32>
    %18 = vector.multi_reduction <add>, %17, %cst_7 [2] : vector<4x32x32xf32> to vector<4x32xf32>
    %19 = vector.shape_cast %18 : vector<4x32xf32> to vector<4x32x1xf32>
    %20 = tpu.reciprocal %19 {approx = true} : vector<4x32x1xf32> -> vector<4x32x1xf32>
    %21 = vector.broadcast %20 : vector<4x32x1xf32> to vector<4x32x32xf32>
    %22 = arith.mulf %17, %21 : vector<4x32x32xf32>
    %23 = vector.extract_strided_slice %22 {offsets = [0, 0, 0], sizes = [2, 32, 32], strides = [1, 1, 1]} : vector<4x32x32xf32> to vector<2x32x32xf32>
    %24 = vector.extract_strided_slice %7 {offsets = [0, 8], sizes = [128, 8], strides = [1, 1]} : vector<128x64xbf16> to vector<128x8xbf16>
    %25 = vector.shape_cast %24 : vector<128x8xbf16> to vector<4x32x8xbf16>
    %26 = vector.extract_strided_slice %7 {offsets = [0, 40], sizes = [128, 8], strides = [1, 1]} : vector<128x64xbf16> to vector<128x8xbf16>
    %27 = vector.shape_cast %26 : vector<128x8xbf16> to vector<4x32x8xbf16>
    "tpu.trace_start"() <{level = 10 : i32, message = "bld,bmd->blm"}> : () -> ()
    %cst_8 = arith.constant dense<0.000000e+00> : vector<4x32x32xf32>
    %28 = tpu.matmul %25, %27, %cst_8 {dimension_numbers = #tpu.dot_dimension_numbers<[2], [2], [1], [1], [0, 0, 0, 1, 1, 1], [0], [0]>} : vector<4x32x8xbf16>, vector<4x32x8xbf16>, vector<4x32x32xf32> -> vector<4x32x32xf32>
    "tpu.trace_stop"() : () -> ()
    %cst_9 = arith.constant dense<0xFF800000> : vector<4x32xf32>
    %29 = vector.multi_reduction <maximumf>, %28, %cst_9 [2] : vector<4x32x32xf32> to vector<4x32xf32>
    %30 = vector.shape_cast %29 : vector<4x32xf32> to vector<4x32x1xf32>
    %31 = vector.broadcast %30 : vector<4x32x1xf32> to vector<4x32x32xf32>
    %32 = arith.subf %28, %31 : vector<4x32x32xf32>
    %33 = math.exp %32 : vector<4x32x32xf32>
    %cst_10 = arith.constant dense<0.000000e+00> : vector<4x32xf32>
    %34 = vector.multi_reduction <add>, %33, %cst_10 [2] : vector<4x32x32xf32> to vector<4x32xf32>
    %35 = vector.shape_cast %34 : vector<4x32xf32> to vector<4x32x1xf32>
    %36 = tpu.reciprocal %35 {approx = true} : vector<4x32x1xf32> -> vector<4x32x1xf32>
    %37 = vector.broadcast %36 : vector<4x32x1xf32> to vector<4x32x32xf32>
    %38 = arith.mulf %33, %37 : vector<4x32x32xf32>
    %39 = arith.addf %22, %38 : vector<4x32x32xf32>
    %40 = vector.extract_strided_slice %38 {offsets = [0, 0, 0], sizes = [2, 32, 32], strides = [1, 1, 1]} : vector<4x32x32xf32> to vector<2x32x32xf32>
    %41 = vector.extract_strided_slice %7 {offsets = [0, 16], sizes = [128, 8], strides = [1, 1]} : vector<128x64xbf16> to vector<128x8xbf16>
    %42 = vector.shape_cast %41 : vector<128x8xbf16> to vector<4x32x8xbf16>
    %43 = vector.extract_strided_slice %7 {offsets = [0, 48], sizes = [128, 8], strides = [1, 1]} : vector<128x64xbf16> to vector<128x8xbf16>
    %44 = vector.shape_cast %43 : vector<128x8xbf16> to vector<4x32x8xbf16>
    "tpu.trace_start"() <{level = 10 : i32, message = "bld,bmd->blm"}> : () -> ()
    %cst_11 = arith.constant dense<0.000000e+00> : vector<4x32x32xf32>
    %45 = tpu.matmul %42, %44, %cst_11 {dimension_numbers = #tpu.dot_dimension_numbers<[2], [2], [1], [1], [0, 0, 0, 1, 1, 1], [0], [0]>} : vector<4x32x8xbf16>, vector<4x32x8xbf16>, vector<4x32x32xf32> -> vector<4x32x32xf32>
    "tpu.trace_stop"() : () -> ()
    %cst_12 = arith.constant dense<0xFF800000> : vector<4x32xf32>
    %46 = vector.multi_reduction <maximumf>, %45, %cst_12 [2] : vector<4x32x32xf32> to vector<4x32xf32>
    %47 = vector.shape_cast %46 : vector<4x32xf32> to vector<4x32x1xf32>
    %48 = vector.broadcast %47 : vector<4x32x1xf32> to vector<4x32x32xf32>
    %49 = arith.subf %45, %48 : vector<4x32x32xf32>
    %50 = math.exp %49 : vector<4x32x32xf32>
    %cst_13 = arith.constant dense<0.000000e+00> : vector<4x32xf32>
    %51 = vector.multi_reduction <add>, %50, %cst_13 [2] : vector<4x32x32xf32> to vector<4x32xf32>
    %52 = vector.shape_cast %51 : vector<4x32xf32> to vector<4x32x1xf32>
    %53 = tpu.reciprocal %52 {approx = true} : vector<4x32x1xf32> -> vector<4x32x1xf32>
    %54 = vector.broadcast %53 : vector<4x32x1xf32> to vector<4x32x32xf32>
    %55 = arith.mulf %50, %54 : vector<4x32x32xf32>
    %56 = arith.addf %39, %55 : vector<4x32x32xf32>
    %57 = vector.extract_strided_slice %55 {offsets = [0, 0, 0], sizes = [2, 32, 32], strides = [1, 1, 1]} : vector<4x32x32xf32> to vector<2x32x32xf32>
    %58 = vector.extract_strided_slice %7 {offsets = [0, 24], sizes = [128, 8], strides = [1, 1]} : vector<128x64xbf16> to vector<128x8xbf16>
    %59 = vector.shape_cast %58 : vector<128x8xbf16> to vector<4x32x8xbf16>
    %60 = vector.extract_strided_slice %7 {offsets = [0, 56], sizes = [128, 8], strides = [1, 1]} : vector<128x64xbf16> to vector<128x8xbf16>
    %61 = vector.shape_cast %60 : vector<128x8xbf16> to vector<4x32x8xbf16>
    "tpu.trace_start"() <{level = 10 : i32, message = "bld,bmd->blm"}> : () -> ()
    %cst_14 = arith.constant dense<0.000000e+00> : vector<4x32x32xf32>
    %62 = tpu.matmul %59, %61, %cst_14 {dimension_numbers = #tpu.dot_dimension_numbers<[2], [2], [1], [1], [0, 0, 0, 1, 1, 1], [0], [0]>} : vector<4x32x8xbf16>, vector<4x32x8xbf16>, vector<4x32x32xf32> -> vector<4x32x32xf32>
    "tpu.trace_stop"() : () -> ()
    %cst_15 = arith.constant dense<0xFF800000> : vector<4x32xf32>
    %63 = vector.multi_reduction <maximumf>, %62, %cst_15 [2] : vector<4x32x32xf32> to vector<4x32xf32>
    %64 = vector.shape_cast %63 : vector<4x32xf32> to vector<4x32x1xf32>
    %65 = vector.broadcast %64 : vector<4x32x1xf32> to vector<4x32x32xf32>
    %66 = arith.subf %62, %65 : vector<4x32x32xf32>
    %67 = math.exp %66 : vector<4x32x32xf32>
    %cst_16 = arith.constant dense<0.000000e+00> : vector<4x32xf32>
    %68 = vector.multi_reduction <add>, %67, %cst_16 [2] : vector<4x32x32xf32> to vector<4x32xf32>
    %69 = vector.shape_cast %68 : vector<4x32xf32> to vector<4x32x1xf32>
    %70 = tpu.reciprocal %69 {approx = true} : vector<4x32x1xf32> -> vector<4x32x1xf32>
    %71 = vector.broadcast %70 : vector<4x32x1xf32> to vector<4x32x32xf32>
    %72 = arith.mulf %67, %71 : vector<4x32x32xf32>
    %73 = arith.addf %56, %72 : vector<4x32x32xf32>
    %74 = vector.extract_strided_slice %72 {offsets = [0, 0, 0], sizes = [2, 32, 32], strides = [1, 1, 1]} : vector<4x32x32xf32> to vector<2x32x32xf32>
    %cst_17 = arith.constant 2.500000e-01 : f32
    %75 = vector.broadcast %cst_17 : f32 to vector<4x32x32xf32>
    %76 = arith.mulf %73, %75 : vector<4x32x32xf32>
    %77 = vector.extract_strided_slice %76 {offsets = [0, 0, 0], sizes = [2, 32, 32], strides = [1, 1, 1]} : vector<4x32x32xf32> to vector<2x32x32xf32>
    %78 = vector.extract_strided_slice %76 {offsets = [2, 0, 0], sizes = [2, 32, 32], strides = [1, 1, 1]} : vector<4x32x32xf32> to vector<2x32x32xf32>
    %79 = tpu.concatenate %23, %40, %57, %74 in 2 : vector<2x32x32xf32>, vector<2x32x32xf32>, vector<2x32x32xf32>, vector<2x32x32xf32> -> vector<2x32x128xf32>
    %80 = arith.truncf %79 : vector<2x32x128xf32> to vector<2x32x128xbf16>
    %81 = vector.extract_strided_slice %5 {offsets = [0, 64], sizes = [64, 32], strides = [1, 1]} : vector<128x96xf32> to vector<64x32xf32>
    %82 = arith.truncf %81 : vector<64x32xf32> to vector<64x32xbf16>
    %83 = vector.shape_cast %82 : vector<64x32xbf16> to vector<2x32x32xbf16>
    %84 = tpu.concatenate %83, %83, %83, %83 in 1 : vector<2x32x32xbf16>, vector<2x32x32xbf16>, vector<2x32x32xbf16>, vector<2x32x32xbf16> -> vector<2x128x32xbf16>
    %c0_18 = arith.constant 0 : index
    %c0_19 = arith.constant 0 : index
    %85 = vector.load %arg2[%c0_18, %c0_19] : memref<128x32xbf16, #tpu.memory_space<vmem>>, vector<128x32xbf16>
    %86 = vector.shape_cast %85 : vector<128x32xbf16> to vector<1x128x32xbf16>
    %87 = vector.broadcast %86 : vector<1x128x32xbf16> to vector<2x128x32xbf16>
    %88 = arith.mulf %84, %87 : vector<2x128x32xbf16>
    "tpu.trace_start"() <{level = 10 : i32, message = "blm,bme->ble"}> : () -> ()
    %cst_20 = arith.constant dense<0.000000e+00> : vector<2x32x32xf32>
    %89 = tpu.matmul %80, %88, %cst_20 {dimension_numbers = #tpu.dot_dimension_numbers<[2], [1], [1], [2], [0, 0, 0, 1, 1, 2], [0], [0]>} : vector<2x32x128xbf16>, vector<2x128x32xbf16>, vector<2x32x32xf32> -> vector<2x32x32xf32>
    "tpu.trace_stop"() : () -> ()
    %90 = vector.shape_cast %89 : vector<2x32x32xf32> to vector<64x32xf32>
    %91 = arith.truncf %90 : vector<64x32xf32> to vector<64x32xbf16>
    %c0_21 = arith.constant 0 : index
    %c0_22 = arith.constant 0 : index
    %92 = vector.load %arg5[%c0_21, %c0_22] : memref<32x32xbf16, #tpu.memory_space<vmem>>, vector<32x32xbf16>
    %cst_23 = arith.constant dense<0.000000e+00> : vector<64x32xf32>
    %93 = tpu.matmul %91, %92, %cst_23 {dimension_numbers = #tpu.dot_dimension_numbers<[1], [0], [0], [1], [0, 0, 1, 1], [], []>} : vector<64x32xbf16>, vector<32x32xbf16>, vector<64x32xf32> -> vector<64x32xf32>
    %c0_24 = arith.constant 0 : index
    %c0_25 = arith.constant 0 : index
    %94 = vector.load %arg6[%c0_24, %c0_25] : memref<1x32xf32, #tpu.memory_space<vmem>>, vector<1x32xf32>
    %95 = vector.broadcast %94 : vector<1x32xf32> to vector<64x32xf32>
    %96 = arith.addf %93, %95 : vector<64x32xf32>
    %97 = vector.shape_cast %96 : vector<64x32xf32> to vector<2x32x32xf32>
    "tpu.trace_start"() <{level = 10 : i32, message = "btj,bij->bti"}> : () -> ()
    %cst_26 = arith.constant dense<0.000000e+00> : vector<2x32x32xf32>
    %98 = tpu.matmul %77, %78, %cst_26 {dimension_numbers = #tpu.dot_dimension_numbers<[2], [2], [1], [1], [0, 0, 0, 1, 1, 1], [0], [0]>} : vector<2x32x32xf32>, vector<2x32x32xf32>, vector<2x32x32xf32> -> vector<2x32x32xf32>
    "tpu.trace_stop"() : () -> ()
    "tpu.trace_start"() <{level = 10 : i32, message = "btj,bje->bte"}> : () -> ()
    %cst_27 = arith.constant dense<0.000000e+00> : vector<2x32x32xf32>
    %99 = tpu.matmul %98, %97, %cst_27 {dimension_numbers = #tpu.dot_dimension_numbers<[2], [1], [1], [2], [0, 0, 0, 1, 1, 2], [0], [0]>} : vector<2x32x32xf32>, vector<2x32x32xf32>, vector<2x32x32xf32> -> vector<2x32x32xf32>
    "tpu.trace_stop"() : () -> ()
    %100 = vector.shape_cast %99 : vector<2x32x32xf32> to vector<64x32xf32>
    %101 = arith.truncf %100 : vector<64x32xf32> to vector<64x32xbf16>
    %c0_28 = arith.constant 0 : index
    %c0_29 = arith.constant 0 : index
    %102 = vector.load %arg7[%c0_28, %c0_29] : memref<32x64xbf16, #tpu.memory_space<vmem>>, vector<32x64xbf16>
    %cst_30 = arith.constant dense<0.000000e+00> : vector<64x64xf32>
    %103 = tpu.matmul %101, %102, %cst_30 {dimension_numbers = #tpu.dot_dimension_numbers<[1], [0], [0], [1], [0, 0, 1, 1], [], []>} : vector<64x32xbf16>, vector<32x64xbf16>, vector<64x64xf32> -> vector<64x64xf32>
    %c0_31 = arith.constant 0 : index
    %c0_32 = arith.constant 0 : index
    %104 = vector.load %arg8[%c0_31, %c0_32] : memref<1x64xf32, #tpu.memory_space<vmem>>, vector<1x64xf32>
    %105 = vector.broadcast %104 : vector<1x64xf32> to vector<64x64xf32>
    %106 = arith.addf %103, %105 : vector<64x64xf32>
    %cst_33 = arith.constant 0.000000e+00 : f32
    %107 = vector.broadcast %cst_33 : f32 to vector<64x64xf32>
    %108 = arith.maximumf %106, %107 : vector<64x64xf32>
    %109 = arith.truncf %108 : vector<64x64xf32> to vector<64x64xbf16>
    %c0_34 = arith.constant 0 : index
    %c0_35 = arith.constant 0 : index
    %110 = vector.load %arg9[%c0_34, %c0_35] : memref<64x128xbf16, #tpu.memory_space<vmem>>, vector<64x128xbf16>
    %cst_36 = arith.constant dense<0.000000e+00> : vector<64x128xf32>
    %111 = tpu.matmul %109, %110, %cst_36 {dimension_numbers = #tpu.dot_dimension_numbers<[1], [0], [0], [1], [0, 0, 1, 1], [], []>} : vector<64x64xbf16>, vector<64x128xbf16>, vector<64x128xf32> -> vector<64x128xf32>
    %c0_37 = arith.constant 0 : index
    %c0_38 = arith.constant 0 : index
    %112 = vector.load %arg10[%c0_37, %c0_38] : memref<1x128xf32, #tpu.memory_space<vmem>>, vector<1x128xf32>
    %113 = vector.broadcast %112 : vector<1x128xf32> to vector<64x128xf32>
    %114 = arith.addf %111, %113 : vector<64x128xf32>
    %c0_39 = arith.constant 0 : index
    %c0_40 = arith.constant 0 : index
    %115 = vector.load %arg11[%c0_39, %c0_40] : memref<64x128xf32, #tpu.memory_space<vmem>>, vector<64x128xf32>
    tpu.vector_store %arg11[%c0_39, %c0_40], %114 {strides = array<i32>} : memref<64x128xf32, #tpu.memory_space<vmem>>, vector<64x128xf32>,
    return
  }
  func.func @transform_0(%arg0: i32) -> (i32, i32) {
    %c0_i32 = arith.constant 0 : i32
    %c0_i32_0 = arith.constant 0 : i32
    %c0_i32_1 = arith.constant 0 : i32
    return %c0_i32, %c0_i32_0 : i32, i32
  }
  func.func @transform_1(%arg0: i32) -> (i32, i32) {
    %c0_i32 = arith.constant 0 : i32
    %c0_i32_0 = arith.constant 0 : i32
    %c0_i32_1 = arith.constant 0 : i32
    return %c0_i32, %c0_i32_0 : i32, i32
  }
  func.func @transform_2(%arg0: i32) -> (i32, i32) {
    %c0_i32 = arith.constant 0 : i32
    %c0_i32_0 = arith.constant 0 : i32
    %c0_i32_1 = arith.constant 0 : i32
    return %c0_i32, %c0_i32_0 : i32, i32
  }
  func.func @transform_3(%arg0: i32) -> (i32, i32) {
    %c0_i32 = arith.constant 0 : i32
    %c0_i32_0 = arith.constant 0 : i32
    %c0_i32_1 = arith.constant 0 : i32
    return %c0_i32, %c0_i32_0 : i32, i32
  }
  func.func @transform_4(%arg0: i32) -> (i32, i32) {
    %c0_i32 = arith.constant 0 : i32
    %c0_i32_0 = arith.constant 0 : i32
    %c0_i32_1 = arith.constant 0 : i32
    return %c0_i32, %c0_i32_0 : i32, i32
  }
  func.func @transform_5(%arg0: i32) -> (i32, i32) {
    %c0_i32 = arith.constant 0 : i32
    %c0_i32_0 = arith.constant 0 : i32
    %c0_i32_1 = arith.constant 0 : i32
    return %c0_i32, %c0_i32_0 : i32, i32
  }
  func.func @transform_6(%arg0: i32) -> (i32, i32) {
    %c0_i32 = arith.constant 0 : i32
    %c0_i32_0 = arith.constant 0 : i32
    %c0_i32_1 = arith.constant 0 : i32
    return %c0_i32, %c0_i32_0 : i32, i32
  }
  func.func @transform_7(%arg0: i32) -> (i32, i32) {
    %c0_i32 = arith.constant 0 : i32
    %c0_i32_0 = arith.constant 0 : i32
    %c0_i32_1 = arith.constant 0 : i32
    return %c0_i32, %c0_i32_0 : i32, i32
  }
  func.func @transform_8(%arg0: i32) -> (i32, i32) {
    %c0_i32 = arith.constant 0 : i32
    %c0_i32_0 = arith.constant 0 : i32
    %c0_i32_1 = arith.constant 0 : i32
    return %c0_i32, %c0_i32_0 : i32, i32
  }
  func.func @transform_9(%arg0: i32) -> (i32, i32) {
    %c0_i32 = arith.constant 0 : i32
    %c0_i32_0 = arith.constant 0 : i32
    %c0_i32_1 = arith.constant 0 : i32
    return %c0_i32, %c0_i32_0 : i32, i32
  }
  func.func @transform_10(%arg0: i32) -> (i32, i32) {
    %c0_i32 = arith.constant 0 : i32
    %c0_i32_0 = arith.constant 0 : i32
    %c0_i32_1 = arith.constant 0 : i32
    return %c0_i32, %c0_i32_0 : i32, i32
  }
}

</mosaic_0001>

<llo_original>
// kernel: encoder_block_forward.1
$region0: #{encoder_block_forward.1}
  #allocation0 [shape = 'u32[]', space=smem, size = 0x4, offset = 0x4, fixed_abs, tag = 'smem constant byte address 0x4 - core index']
  #allocation1 [shape = 'u32[72,128]{1,0:T(1,128)}', space=vmem, size = 0x9000, scoped, tag = 'internal scratch']
  %s0 = inlined_call_operand.vmem [shape: bf16[128,32], index: 0, kind: input, shape index: {}]
  %s1 = inlined_call_operand.vmem [shape: bf16[128,32], index: 1, kind: input, shape index: {}]
  %s2 = inlined_call_operand.vmem [shape: bf16[32,96], index: 2, kind: input, shape index: {}]
  %s3 = inlined_call_operand.vmem [shape: f32[1,96], index: 3, kind: input, shape index: {}]
  %s4 = inlined_call_operand.vmem [shape: bf16[32,32], index: 4, kind: input, shape index: {}]
  %s5 = inlined_call_operand.vmem [shape: f32[1,32], index: 5, kind: input, shape index: {}]
  %s6 = inlined_call_operand.vmem [shape: bf16[32,64], index: 6, kind: input, shape index: {}]
  %s7 = inlined_call_operand.vmem [shape: f32[1,64], index: 7, kind: input, shape index: {}]
  %s8 = inlined_call_operand.vmem [shape: bf16[64,128], index: 8, kind: input, shape index: {}]
  %s9 = inlined_call_operand.vmem [shape: f32[1,128], index: 9, kind: input, shape index: {}]
  %s10 = inlined_call_operand.vmem [shape: f32[64,128], index: 10, kind: output, shape index: {}]
  %s11 = sld [smem:[#allocation0]]
  $region50: #{encoder_block_forward.1} parent=0
    _
  %s13 = ssub.s32 1, %s11
  %s14 = scalar_select 0, %s13, %s11
  // Predicated region
  $region2: #{encoder_block_forward.1} parent=0 // pred_check
    _
  $region3: #{encoder_block_forward.1} parent=0 // pred_check_branch
    %16 = sbr.rel (0) target = $region5
  $region4: #{encoder_block_forward.1} parent=0 // pred_region
    _
  $region5: #{encoder_block_forward.1} parent=0 // pred_fallthru
    _
  // Predicated region
  $region6: #{encoder_block_forward.1} parent=0 // pred_check
    _
  $region7: #{encoder_block_forward.1} parent=0 // pred_check_branch
    %18 = sbr.rel (0) target = $region9
  $region8: #{encoder_block_forward.1} parent=0 // pred_region
    _
  $region9: #{encoder_block_forward.1} parent=0 // pred_fallthru
    _
  // Predicated region
  $region10: #{encoder_block_forward.1} parent=0 // pred_check
    _
  $region11: #{encoder_block_forward.1} parent=0 // pred_check_branch
    %20 = sbr.rel (0) target = $region13
  $region12: #{encoder_block_forward.1} parent=0 // pred_region
    _
  $region13: #{encoder_block_forward.1} parent=0 // pred_fallthru
    _
  // Predicated region
  $region14: #{encoder_block_forward.1} parent=0 // pred_check
    _
  $region15: #{encoder_block_forward.1} parent=0 // pred_check_branch
    %22 = sbr.rel (0) target = $region17
  $region16: #{encoder_block_forward.1} parent=0 // pred_region
    _
  $region17: #{encoder_block_forward.1} parent=0 // pred_fallthru
    _
  // Predicated region
  $region18: #{encoder_block_forward.1} parent=0 // pred_check
    _
  $region19: #{encoder_block_forward.1} parent=0 // pred_check_branch
    %24 = sbr.rel (0) target = $region21
  $region20: #{encoder_block_forward.1} parent=0 // pred_region
    _
  $region21: #{encoder_block_forward.1} parent=0 // pred_fallthru
    _
  // Predicated region
  $region22: #{encoder_block_forward.1} parent=0 // pred_check
    _
  $region23: #{encoder_block_forward.1} parent=0 // pred_check_branch
    %26 = sbr.rel (0) target = $region25
  $region24: #{encoder_block_forward.1} parent=0 // pred_region
    _
  $region25: #{encoder_block_forward.1} parent=0 // pred_fallthru
    _
  // Predicated region
  $region26: #{encoder_block_forward.1} parent=0 // pred_check
    _
  $region27: #{encoder_block_forward.1} parent=0 // pred_check_branch
    %28 = sbr.rel (0) target = $region29
  $region28: #{encoder_block_forward.1} parent=0 // pred_region
    _
  $region29: #{encoder_block_forward.1} parent=0 // pred_fallthru
    _
  // Predicated region
  $region30: #{encoder_block_forward.1} parent=0 // pred_check
    _
  $region31: #{encoder_block_forward.1} parent=0 // pred_check_branch
    %30 = sbr.rel (0) target = $region33
  $region32: #{encoder_block_forward.1} parent=0 // pred_region
    _
  $region33: #{encoder_block_forward.1} parent=0 // pred_fallthru
    _
  // Predicated region
  $region34: #{encoder_block_forward.1} parent=0 // pred_check
    _
  $region35: #{encoder_block_forward.1} parent=0 // pred_check_branch
    %32 = sbr.rel (0) target = $region37
  $region36: #{encoder_block_forward.1} parent=0 // pred_region
    _
  $region37: #{encoder_block_forward.1} parent=0 // pred_fallthru
    _
  // Predicated region
  $region38: #{encoder_block_forward.1} parent=0 // pred_check
    _
  $region39: #{encoder_block_forward.1} parent=0 // pred_check_branch
    %34 = sbr.rel (0) target = $region41
  $region40: #{encoder_block_forward.1} parent=0 // pred_region
    _
  $region41: #{encoder_block_forward.1} parent=0 // pred_fallthru
    _
  %v36 = vld [vmem:[%s0] sm:$0xf]
  %v37 = vld [vmem:[%s0 + $0x4] sm:$0xf]
  %v38 = vld [vmem:[%s0 + $0x8] sm:$0xf]
  %v39 = vld [vmem:[%s0 + $0xc] sm:$0xf]
  %v40 = vld [vmem:[%s0 + $0x10] sm:$0xf]
  %v41 = vld [vmem:[%s0 + $0x14] sm:$0xf]
  %v42 = vld [vmem:[%s0 + $0x18] sm:$0xf]
  %v43 = vld [vmem:[%s0 + $0x1c] sm:$0xf]
  %v44 = vld [vmem:[%s0 + $0x20] sm:$0xf]
  %v45 = vld [vmem:[%s0 + $0x24] sm:$0xf]
  %v46 = vld [vmem:[%s0 + $0x28] sm:$0xf]
  %v47 = vld [vmem:[%s0 + $0x2c] sm:$0xf]
  %v48 = vld [vmem:[%s0 + $0x30] sm:$0xf]
  %v49 = vld [vmem:[%s0 + $0x34] sm:$0xf]
  %v50 = vld [vmem:[%s0 + $0x38] sm:$0xf]
  %v51 = vld [vmem:[%s0 + $0x3c] sm:$0xf]
  %v52 = vld [vmem:[%s2] sm:$0xf]
  %v53 = vld [vmem:[%s2 + $0x4] sm:$0xf]
  %v54 = vld [vmem:[%s2 + $0x8] sm:$0xf]
  %v55 = vld [vmem:[%s2 + $0xc] sm:$0xf]
  %v56 = vld [vmem:[%s3] sm:$0x1]
  %v58 = vperm.slane %v56, 0
  %v76 = vunpack.c.l.b16 %v36
  %v77 = vunpack.c.l.b16 %v37
  %v78 = vunpack.c.l.b16 %v38
  %v79 = vunpack.c.l.b16 %v39
  %v80 = vunpack.c.l.b16 %v40
  %v81 = vunpack.c.l.b16 %v41
  %v82 = vunpack.c.l.b16 %v42
  %v83 = vunpack.c.l.b16 %v43
  %v84 = vunpack.c.l.b16 %v44
  %v85 = vunpack.c.l.b16 %v45
  %v86 = vunpack.c.l.b16 %v46
  %v87 = vunpack.c.l.b16 %v47
  %v88 = vunpack.c.l.b16 %v48
  %v89 = vunpack.c.l.b16 %v49
  %v90 = vunpack.c.l.b16 %v50
  %v91 = vunpack.c.l.b16 %v51
  %v92 = vpack.c.b16 %v77, %v76
  %v93 = vpack.c.b16 %v79, %v78
  %v94 = vpack.c.b16 %v81, %v80
  %v95 = vpack.c.b16 %v83, %v82
  %v96 = vpack.c.b16 %v85, %v84
  %v97 = vpack.c.b16 %v87, %v86
  %v98 = vpack.c.b16 %v89, %v88
  %v99 = vpack.c.b16 %v91, %v90
  %v104 = vunpack.c.l.b16 %v52
  %v105 = vunpack.c.l.b16 %v53
  %v106 = vunpack.c.l.b16 %v54
  %v107 = vunpack.c.l.b16 %v55
  %v108 = vpack.c.b16 %v105, %v104
  %v109 = vpack.c.b16 %v107, %v106
  %vm112 = vcmask 261120
  %v114 = vsel %vm112, %v92, 0
  %v117 = vsel %vm112, %v93, 0
  %v120 = vsel %vm112, %v94, 0
  %v123 = vsel %vm112, %v95, 0
  %v126 = vsel %vm112, %v96, 0
  %v129 = vsel %vm112, %v97, 0
  %v132 = vsel %vm112, %v98, 0
  %v135 = vsel %vm112, %v99, 0
  %137 = vmatpush.bf16.msra.mxu0 0
  %138 = vmatpush.bf16.msra.mxu0 0
  %139 = vmatpush.bf16.msra.mxu0 0
  %140 = vmatpush.bf16.msra.mxu0 0
  %141 = vmatpush.bf16.msra.mxu0 0
  %142 = vmatpush.bf16.msra.mxu0 0
  %143 = vmatpush.bf16.msra.mxu0 %v109
  %144 = vmatpush.bf16.msra.mxu0 %v108
  %145 = vmatmul.bf16.gmra.mxu0 %v114
  %v146 = vpop.f32.mrf.mxu0
  %v147 = vadd.f32 %v58, %v146
  %v148 = vpop.f32.mrf.mxu0
  %v149 = vadd.f32 %v58, %v148
  %150 = vmatmul.bf16.gmra.mxu0 %v117
  %v151 = vpop.f32.mrf.mxu0
  %v152 = vadd.f32 %v58, %v151
  %v153 = vpop.f32.mrf.mxu0
  %v154 = vadd.f32 %v58, %v153
  %155 = vmatmul.bf16.gmra.mxu0 %v120
  %v156 = vpop.f32.mrf.mxu0
  %v157 = vadd.f32 %v58, %v156
  %v158 = vpop.f32.mrf.mxu0
  %v159 = vadd.f32 %v58, %v158
  %160 = vmatmul.bf16.gmra.mxu0 %v123
  %v161 = vpop.f32.mrf.mxu0
  %v162 = vadd.f32 %v58, %v161
  %v163 = vpop.f32.mrf.mxu0
  %v164 = vadd.f32 %v58, %v163
  %165 = vmatmul.bf16.gmra.mxu0 %v126
  %v166 = vpop.f32.mrf.mxu0
  %v167 = vadd.f32 %v58, %v166
  %v168 = vpop.f32.mrf.mxu0
  %v169 = vadd.f32 %v58, %v168
  %170 = vmatmul.bf16.gmra.mxu0 %v129
  %v171 = vpop.f32.mrf.mxu0
  %v172 = vadd.f32 %v58, %v171
  %v173 = vpop.f32.mrf.mxu0
  %v174 = vadd.f32 %v58, %v173
  %175 = vmatmul.bf16.gmra.mxu0 %v132
  %v176 = vpop.f32.mrf.mxu0
  %v177 = vadd.f32 %v58, %v176
  %v178 = vpop.f32.mrf.mxu0
  %v179 = vadd.f32 %v58, %v178
  %180 = vmatmul.bf16.gmra.mxu0 %v135
  %v181 = vpop.f32.mrf.mxu0
  %v182 = vadd.f32 %v58, %v181
  %v183 = vpop.f32.mrf.mxu0
  %v184 = vadd.f32 %v58, %v183
  %185 = vdwg.mxu0
  %v186 = vpack.c.bf16 %v147, %v147
  %v187 = vpack.c.bf16 %v149, %v149
  %v188 = vpack.c.bf16 %v152, %v152
  %v189 = vpack.c.bf16 %v154, %v154
  %v190 = vpack.c.bf16 %v157, %v157
  %v191 = vpack.c.bf16 %v159, %v159
  %v192 = vpack.c.bf16 %v162, %v162
  %v193 = vpack.c.bf16 %v164, %v164
  %v194 = vpack.c.bf16 %v167, %v167
  %v195 = vpack.c.bf16 %v169, %v169
  %v196 = vpack.c.bf16 %v172, %v172
  %v197 = vpack.c.bf16 %v174, %v174
  %v198 = vpack.c.bf16 %v177, %v177
  %v199 = vpack.c.bf16 %v179, %v179
  %v200 = vpack.c.bf16 %v182, %v182
  %v201 = vpack.c.bf16 %v184, %v184
  %v206 = vunpack.c.l.b16 %v186
  %v207 = vunpack.c.l.b16 %v187
  %v208 = vunpack.c.l.b16 %v188
  %v209 = vunpack.c.l.b16 %v189
  %v210 = vpack.c.b16 %v207, %v206
  %v211 = vpack.c.b16 %v209, %v208
  %212 = vrot.lane.b32.xlu0 %v210, 96
  %v213 = vpop.permute.xlu0 %212
  %214 = vrot.lane.b32.xlu0 %v211, 96
  %v215 = vpop.permute.xlu0 %214
  %vm216 = vcmask 64512
  %v218 = vsel %vm216, %v210, 0
  %v221 = vsel %vm216, %v211, 0
  %v224 = vsel %vm216, %v213, 0
  %v227 = vsel %vm216, %v215, 0
  %229 = vmatpush.bf16.xpose.msra.mxu0 0
  %230 = vmatpush.bf16.xpose.msra.mxu0 0
  %231 = vmatpush.bf16.xpose.msra.mxu0 0
  %232 = vmatpush.bf16.xpose.msra.mxu0 0
  %233 = vmatpush.bf16.xpose.msra.mxu0 0
  %234 = vmatpush.bf16.xpose.msra.mxu0 0
  %235 = vmatpush.bf16.xpose.msra.mxu0 %v227
  %236 = vmatpush.bf16.xpose.msra.mxu0 %v224
  %237 = vmatmul.bf16.gmra.mxu0 %v218
  %v238 = vpop.f32.mrf.mxu0
  %v239 = vadd.f32 0.0, %v238
  %v240 = vpop.f32.mrf.mxu0
  %v241 = vadd.f32 0.0, %v240
  %242 = vmatmul.bf16.gmra.mxu0 %v221
  %v243 = vpop.f32.mrf.mxu0
  %v244 = vadd.f32 0.0, %v243
  %v245 = vpop.f32.mrf.mxu0
  %v246 = vadd.f32 0.0, %v245
  %247 = vdwg.mxu0
  %v252 = vunpack.c.l.b16 %v190
  %v253 = vunpack.c.l.b16 %v191
  %v254 = vunpack.c.l.b16 %v192
  %v255 = vunpack.c.l.b16 %v193
  %v256 = vpack.c.b16 %v253, %v252
  %v257 = vpack.c.b16 %v255, %v254
  %258 = vrot.lane.b32.xlu0 %v256, 96
  %v259 = vpop.permute.xlu0 %258
  %260 = vrot.lane.b32.xlu0 %v257, 96
  %v261 = vpop.permute.xlu0 %260
  %v263 = vsel %vm216, %v256, 0
  %v266 = vsel %vm216, %v257, 0
  %v269 = vsel %vm216, %v259, 0
  %v272 = vsel %vm216, %v261, 0
  %274 = vmatpush.bf16.xpose.msra.mxu0 0
  %275 = vmatpush.bf16.xpose.msra.mxu0 0
  %276 = vmatpush.bf16.xpose.msra.mxu0 0
  %277 = vmatpush.bf16.xpose.msra.mxu0 0
  %278 = vmatpush.bf16.xpose.msra.mxu0 0
  %279 = vmatpush.bf16.xpose.msra.mxu0 0
  %280 = vmatpush.bf16.xpose.msra.mxu0 %v272
  %281 = vmatpush.bf16.xpose.msra.mxu0 %v269
  %282 = vmatmul.bf16.gmra.mxu0 %v263
  %v283 = vpop.f32.mrf.mxu0
  %v284 = vadd.f32 0.0, %v283
  %v285 = vpop.f32.mrf.mxu0
  %v286 = vadd.f32 0.0, %v285
  %287 = vmatmul.bf16.gmra.mxu0 %v266
  %v288 = vpop.f32.mrf.mxu0
  %v289 = vadd.f32 0.0, %v288
  %v290 = vpop.f32.mrf.mxu0
  %v291 = vadd.f32 0.0, %v290
  %292 = vdwg.mxu0
  %v297 = vunpack.c.l.b16 %v194
  %v298 = vunpack.c.l.b16 %v195
  %v299 = vunpack.c.l.b16 %v196
  %v300 = vunpack.c.l.b16 %v197
  %v301 = vpack.c.b16 %v298, %v297
  %v302 = vpack.c.b16 %v300, %v299
  %303 = vrot.lane.b32.xlu0 %v301, 96
  %v304 = vpop.permute.xlu0 %303
  %305 = vrot.lane.b32.xlu0 %v302, 96
  %v306 = vpop.permute.xlu0 %305
  %v308 = vsel %vm216, %v301, 0
  %v311 = vsel %vm216, %v302, 0
  %v314 = vsel %vm216, %v304, 0
  %v317 = vsel %vm216, %v306, 0
  %319 = vmatpush.bf16.xpose.msra.mxu0 0
  %320 = vmatpush.bf16.xpose.msra.mxu0 0
  %321 = vmatpush.bf16.xpose.msra.mxu0 0
  %322 = vmatpush.bf16.xpose.msra.mxu0 0
  %323 = vmatpush.bf16.xpose.msra.mxu0 0
  %324 = vmatpush.bf16.xpose.msra.mxu0 0
  %325 = vmatpush.bf16.xpose.msra.mxu0 %v317
  %326 = vmatpush.bf16.xpose.msra.mxu0 %v314
  %327 = vmatmul.bf16.gmra.mxu0 %v308
  %v328 = vpop.f32.mrf.mxu0
  %v329 = vadd.f32 0.0, %v328
  %v330 = vpop.f32.mrf.mxu0
  %v331 = vadd.f32 0.0, %v330
  %332 = vmatmul.bf16.gmra.mxu0 %v311
  %v333 = vpop.f32.mrf.mxu0
  %v334 = vadd.f32 0.0, %v333
  %v335 = vpop.f32.mrf.mxu0
  %v336 = vadd.f32 0.0, %v335
  %337 = vdwg.mxu0
  %v342 = vunpack.c.l.b16 %v198
  %v343 = vunpack.c.l.b16 %v199
  %v344 = vunpack.c.l.b16 %v200
  %v345 = vunpack.c.l.b16 %v201
  %v346 = vpack.c.b16 %v343, %v342
  %v347 = vpack.c.b16 %v345, %v344
  %348 = vrot.lane.b32.xlu0 %v346, 96
  %v349 = vpop.permute.xlu0 %348
  %350 = vrot.lane.b32.xlu0 %v347, 96
  %v351 = vpop.permute.xlu0 %350
  %v353 = vsel %vm216, %v346, 0
  %v356 = vsel %vm216, %v347, 0
  %v359 = vsel %vm216, %v349, 0
  %v362 = vsel %vm216, %v351, 0
  %364 = vmatpush.bf16.xpose.msra.mxu0 0
  %365 = vmatpush.bf16.xpose.msra.mxu0 0
  %366 = vmatpush.bf16.xpose.msra.mxu0 0
  %367 = vmatpush.bf16.xpose.msra.mxu0 0
  %368 = vmatpush.bf16.xpose.msra.mxu0 0
  %369 = vmatpush.bf16.xpose.msra.mxu0 0
  %370 = vmatpush.bf16.xpose.msra.mxu0 %v362
  %371 = vmatpush.bf16.xpose.msra.mxu0 %v359
  %372 = vmatmul.bf16.gmra.mxu0 %v353
  %v373 = vpop.f32.mrf.mxu0
  %v374 = vadd.f32 0.0, %v373
  %v375 = vpop.f32.mrf.mxu0
  %v376 = vadd.f32 0.0, %v375
  %377 = vmatmul.bf16.gmra.mxu0 %v356
  %v378 = vpop.f32.mrf.mxu0
  %v379 = vadd.f32 0.0, %v378
  %v380 = vpop.f32.mrf.mxu0
  %v381 = vadd.f32 0.0, %v380
  %382 = vdwg.mxu0
  %v383 = vsel %vm112, %v239, -inf
  %384 = vmax.xlane.f32.xlu0 %v383
  %v385 = vpop.xlane.xlu0 %384
  %v386 = vsel %vm112, %v241, -inf
  %387 = vmax.xlane.f32.xlu0 %v386
  %v388 = vpop.xlane.xlu0 %387
  %v389 = vsel %vm112, %v244, -inf
  %390 = vmax.xlane.f32.xlu0 %v389
  %v391 = vpop.xlane.xlu0 %390
  %v392 = vsel %vm112, %v246, -inf
  %393 = vmax.xlane.f32.xlu0 %v392
  %v394 = vpop.xlane.xlu0 %393
  %v395 = vsel %vm112, %v284, -inf
  %396 = vmax.xlane.f32.xlu0 %v395
  %v397 = vpop.xlane.xlu0 %396
  %v398 = vsel %vm112, %v286, -inf
  %399 = vmax.xlane.f32.xlu0 %v398
  %v400 = vpop.xlane.xlu0 %399
  %v401 = vsel %vm112, %v289, -inf
  %402 = vmax.xlane.f32.xlu0 %v401
  %v403 = vpop.xlane.xlu0 %402
  %v404 = vsel %vm112, %v291, -inf
  %405 = vmax.xlane.f32.xlu0 %v404
  %v406 = vpop.xlane.xlu0 %405
  %v407 = vsel %vm112, %v329, -inf
  %408 = vmax.xlane.f32.xlu0 %v407
  %v409 = vpop.xlane.xlu0 %408
  %v410 = vsel %vm112, %v331, -inf
  %411 = vmax.xlane.f32.xlu0 %v410
  %v412 = vpop.xlane.xlu0 %411
  %v413 = vsel %vm112, %v334, -inf
  %414 = vmax.xlane.f32.xlu0 %v413
  %v415 = vpop.xlane.xlu0 %414
  %v416 = vsel %vm112, %v336, -inf
  %417 = vmax.xlane.f32.xlu0 %v416
  %v418 = vpop.xlane.xlu0 %417
  %v419 = vsel %vm112, %v374, -inf
  %420 = vmax.xlane.f32.xlu0 %v419
  %v421 = vpop.xlane.xlu0 %420
  %v422 = vsel %vm112, %v376, -inf
  %423 = vmax.xlane.f32.xlu0 %v422
  %v424 = vpop.xlane.xlu0 %423
  %v425 = vsel %vm112, %v379, -inf
  %426 = vmax.xlane.f32.xlu0 %v425
  %v427 = vpop.xlane.xlu0 %426
  %v428 = vsel %vm112, %v381, -inf
  %429 = vmax.xlane.f32.xlu0 %v428
  %v430 = vpop.xlane.xlu0 %429
  %v431 = vsub.f32 %v239, %v385
  %v432 = vsub.f32 %v241, %v388
  %v433 = vsub.f32 %v244, %v391
  %v434 = vsub.f32 %v246, %v394
  %v435 = vsub.f32 %v284, %v397
  %v436 = vsub.f32 %v286, %v400
  %v437 = vsub.f32 %v289, %v403
  %v438 = vsub.f32 %v291, %v406
  %v439 = vsub.f32 %v329, %v409
  %v440 = vsub.f32 %v331, %v412
  %v441 = vsub.f32 %v334, %v415
  %v442 = vsub.f32 %v336, %v418
  %v443 = vsub.f32 %v374, %v421
  %v444 = vsub.f32 %v376, %v424
  %v445 = vsub.f32 %v379, %v427
  %v446 = vsub.f32 %v381, %v430
  %v447 = vmul.f32 %v431, 1.442695
  %v448 = vpow.pop %v447
  %v449 = vmul.f32 %v432, 1.442695
  %v450 = vpow.pop %v449
  %v451 = vmul.f32 %v433, 1.442695
  %v452 = vpow.pop %v451
  %v453 = vmul.f32 %v434, 1.442695
  %v454 = vpow.pop %v453
  %v455 = vmul.f32 %v435, 1.442695
  %v456 = vpow.pop %v455
  %v457 = vmul.f32 %v436, 1.442695
  %v458 = vpow.pop %v457
  %v459 = vmul.f32 %v437, 1.442695
  %v460 = vpow.pop %v459
  %v461 = vmul.f32 %v438, 1.442695
  %v462 = vpow.pop %v461
  %v463 = vmul.f32 %v439, 1.442695
  %v464 = vpow.pop %v463
  %v465 = vmul.f32 %v440, 1.442695
  %v466 = vpow.pop %v465
  %v467 = vmul.f32 %v441, 1.442695
  %v468 = vpow.pop %v467
  %v469 = vmul.f32 %v442, 1.442695
  %v470 = vpow.pop %v469
  %v471 = vmul.f32 %v443, 1.442695
  %v472 = vpow.pop %v471
  %v473 = vmul.f32 %v444, 1.442695
  %v474 = vpow.pop %v473
  %v475 = vmul.f32 %v445, 1.442695
  %v476 = vpow.pop %v475
  %v477 = vmul.f32 %v446, 1.442695
  %v478 = vpow.pop %v477
  %v479 = vsel %vm112, %v448, 0.0
  %480 = vadd.xlane.f32.xlu0 %v479
  %v481 = vpop.xlane.xlu0 %480
  %v482 = vsel %vm112, %v450, 0.0
  %483 = vadd.xlane.f32.xlu0 %v482
  %v484 = vpop.xlane.xlu0 %483
  %v485 = vsel %vm112, %v452, 0.0
  %486 = vadd.xlane.f32.xlu0 %v485
  %v487 = vpop.xlane.xlu0 %486
  %v488 = vsel %vm112, %v454, 0.0
  %489 = vadd.xlane.f32.xlu0 %v488
  %v490 = vpop.xlane.xlu0 %489
  %v491 = vsel %vm112, %v456, 0.0
  %492 = vadd.xlane.f32.xlu0 %v491
  %v493 = vpop.xlane.xlu0 %492
  %v494 = vsel %vm112, %v458, 0.0
  %495 = vadd.xlane.f32.xlu0 %v494
  %v496 = vpop.xlane.xlu0 %495
  %v497 = vsel %vm112, %v460, 0.0
  %498 = vadd.xlane.f32.xlu0 %v497
  %v499 = vpop.xlane.xlu0 %498
  %v500 = vsel %vm112, %v462, 0.0
  %501 = vadd.xlane.f32.xlu0 %v500
  %v502 = vpop.xlane.xlu0 %501
  %v503 = vsel %vm112, %v464, 0.0
  %504 = vadd.xlane.f32.xlu0 %v503
  %v505 = vpop.xlane.xlu0 %504
  %v506 = vsel %vm112, %v466, 0.0
  %507 = vadd.xlane.f32.xlu0 %v506
  %v508 = vpop.xlane.xlu0 %507
  %v509 = vsel %vm112, %v468, 0.0
  %510 = vadd.xlane.f32.xlu0 %v509
  %v511 = vpop.xlane.xlu0 %510
  %v512 = vsel %vm112, %v470, 0.0
  %513 = vadd.xlane.f32.xlu0 %v512
  %v514 = vpop.xlane.xlu0 %513
  %v515 = vsel %vm112, %v472, 0.0
  %516 = vadd.xlane.f32.xlu0 %v515
  %v517 = vpop.xlane.xlu0 %516
  %v518 = vsel %vm112, %v474, 0.0
  %519 = vadd.xlane.f32.xlu0 %v518
  %v520 = vpop.xlane.xlu0 %519
  %v521 = vsel %vm112, %v476, 0.0
  %522 = vadd.xlane.f32.xlu0 %v521
  %v523 = vpop.xlane.xlu0 %522
  %v524 = vsel %vm112, %v478, 0.0
  %525 = vadd.xlane.f32.xlu0 %v524
  %v526 = vpop.xlane.xlu0 %525
  %v527 = vrcp.pop %v481
  %v528 = vrcp.pop %v484
  %v529 = vrcp.pop %v487
  %v530 = vrcp.pop %v490
  %v531 = vrcp.pop %v493
  %v532 = vrcp.pop %v496
  %v533 = vrcp.pop %v499
  %v534 = vrcp.pop %v502
  %v535 = vrcp.pop %v505
  %v536 = vrcp.pop %v508
  %v537 = vrcp.pop %v511
  %v538 = vrcp.pop %v514
  %v539 = vrcp.pop %v517
  %v540 = vrcp.pop %v520
  %v541 = vrcp.pop %v523
  %v542 = vrcp.pop %v526
  %v543 = vmul.f32 %v448, %v527
  %v544 = vmul.f32 %v450, %v528
  %v545 = vmul.f32 %v452, %v529
  %v546 = vmul.f32 %v454, %v530
  %v547 = vmul.f32 %v456, %v531
  %v548 = vmul.f32 %v458, %v532
  %v549 = vmul.f32 %v460, %v533
  %v550 = vmul.f32 %v462, %v534
  %v551 = vmul.f32 %v464, %v535
  %v552 = vmul.f32 %v466, %v536
  %v553 = vmul.f32 %v468, %v537
  %v554 = vmul.f32 %v470, %v538
  %v555 = vmul.f32 %v472, %v539
  %v556 = vmul.f32 %v474, %v540
  %v557 = vmul.f32 %v476, %v541
  %v558 = vmul.f32 %v478, %v542
  %559 = vrot.lane.b32.xlu0 %v210, 120
  %v560 = vpop.permute.xlu0 %559
  %561 = vrot.lane.b32.xlu0 %v211, 120
  %v562 = vpop.permute.xlu0 %561
  %563 = vrot.lane.b32.xlu0 %v210, 88
  %v564 = vpop.permute.xlu0 %563
  %565 = vrot.lane.b32.xlu0 %v211, 88
  %v566 = vpop.permute.xlu0 %565
  %v568 = vsel %vm216, %v560, 0
  %v571 = vsel %vm216, %v562, 0
  %v574 = vsel %vm216, %v564, 0
  %v577 = vsel %vm216, %v566, 0
  %579 = vmatpush.bf16.xpose.msra.mxu0 0
  %580 = vmatpush.bf16.xpose.msra.mxu0 0
  %581 = vmatpush.bf16.xpose.msra.mxu0 0
  %582 = vmatpush.bf16.xpose.msra.mxu0 0
  %583 = vmatpush.bf16.xpose.msra.mxu0 0
  %584 = vmatpush.bf16.xpose.msra.mxu0 0
  %585 = vmatpush.bf16.xpose.msra.mxu0 %v577
  %586 = vmatpush.bf16.xpose.msra.mxu0 %v574
  %587 = vmatmul.bf16.gmra.mxu0 %v568
  %v588 = vpop.f32.mrf.mxu0
  %v589 = vadd.f32 0.0, %v588
  %v590 = vpop.f32.mrf.mxu0
  %v591 = vadd.f32 0.0, %v590
  %592 = vmatmul.bf16.gmra.mxu0 %v571
  %v593 = vpop.f32.mrf.mxu0
  %v594 = vadd.f32 0.0, %v593
  %v595 = vpop.f32.mrf.mxu0
  %v596 = vadd.f32 0.0, %v595
  %597 = vdwg.mxu0
  %598 = vrot.lane.b32.xlu0 %v256, 120
  %v599 = vpop.permute.xlu0 %598
  %600 = vrot.lane.b32.xlu0 %v257, 120
  %v601 = vpop.permute.xlu0 %600
  %602 = vrot.lane.b32.xlu0 %v256, 88
  %v603 = vpop.permute.xlu0 %602
  %604 = vrot.lane.b32.xlu0 %v257, 88
  %v605 = vpop.permute.xlu0 %604
  %v607 = vsel %vm216, %v599, 0
  %v610 = vsel %vm216, %v601, 0
  %v613 = vsel %vm216, %v603, 0
  %v616 = vsel %vm216, %v605, 0
  %618 = vmatpush.bf16.xpose.msra.mxu0 0
  %619 = vmatpush.bf16.xpose.msra.mxu0 0
  %620 = vmatpush.bf16.xpose.msra.mxu0 0
  %621 = vmatpush.bf16.xpose.msra.mxu0 0
  %622 = vmatpush.bf16.xpose.msra.mxu0 0
  %623 = vmatpush.bf16.xpose.msra.mxu0 0
  %624 = vmatpush.bf16.xpose.msra.mxu0 %v616
  %625 = vmatpush.bf16.xpose.msra.mxu0 %v613
  %626 = vmatmul.bf16.gmra.mxu0 %v607
  %v627 = vpop.f32.mrf.mxu0
  %v628 = vadd.f32 0.0, %v627
  %v629 = vpop.f32.mrf.mxu0
  %v630 = vadd.f32 0.0, %v629
  %631 = vmatmul.bf16.gmra.mxu0 %v610
  %v632 = vpop.f32.mrf.mxu0
  %v633 = vadd.f32 0.0, %v632
  %v634 = vpop.f32.mrf.mxu0
  %v635 = vadd.f32 0.0, %v634
  %636 = vdwg.mxu0
  %637 = vrot.lane.b32.xlu0 %v301, 120
  %v638 = vpop.permute.xlu0 %637
  %639 = vrot.lane.b32.xlu0 %v302, 120
  %v640 = vpop.permute.xlu0 %639
  %641 = vrot.lane.b32.xlu0 %v301, 88
  %v642 = vpop.permute.xlu0 %641
  %643 = vrot.lane.b32.xlu0 %v302, 88
  %v644 = vpop.permute.xlu0 %643
  %v646 = vsel %vm216, %v638, 0
  %v649 = vsel %vm216, %v640, 0
  %v652 = vsel %vm216, %v642, 0
  %v655 = vsel %vm216, %v644, 0
  %657 = vmatpush.bf16.xpose.msra.mxu0 0
  %658 = vmatpush.bf16.xpose.msra.mxu0 0
  %659 = vmatpush.bf16.xpose.msra.mxu0 0
  %660 = vmatpush.bf16.xpose.msra.mxu0 0
  %661 = vmatpush.bf16.xpose.msra.mxu0 0
  %662 = vmatpush.bf16.xpose.msra.mxu0 0
  %663 = vmatpush.bf16.xpose.msra.mxu0 %v655
  %664 = vmatpush.bf16.xpose.msra.mxu0 %v652
  %665 = vmatmul.bf16.gmra.mxu0 %v646
  %v666 = vpop.f32.mrf.mxu0
  %v667 = vadd.f32 0.0, %v666
  %v668 = vpop.f32.mrf.mxu0
  %v669 = vadd.f32 0.0, %v668
  %670 = vmatmul.bf16.gmra.mxu0 %v649
  %v671 = vpop.f32.mrf.mxu0
  %v672 = vadd.f32 0.0, %v671
  %v673 = vpop.f32.mrf.mxu0
  %v674 = vadd.f32 0.0, %v673
  %675 = vdwg.mxu0
  %676 = vrot.lane.b32.xlu0 %v346, 120
  %v677 = vpop.permute.xlu0 %676
  %678 = vrot.lane.b32.xlu0 %v347, 120
  %v679 = vpop.permute.xlu0 %678
  %680 = vrot.lane.b32.xlu0 %v346, 88
  %v681 = vpop.permute.xlu0 %680
  %682 = vrot.lane.b32.xlu0 %v347, 88
  %v683 = vpop.permute.xlu0 %682
  %v685 = vsel %vm216, %v677, 0
  %v688 = vsel %vm216, %v679, 0
  %v691 = vsel %vm216, %v681, 0
  %v694 = vsel %vm216, %v683, 0
  %696 = vmatpush.bf16.xpose.msra.mxu0 0
  %697 = vmatpush.bf16.xpose.msra.mxu0 0
  %698 = vmatpush.bf16.xpose.msra.mxu0 0
  %699 = vmatpush.bf16.xpose.msra.mxu0 0
  %700 = vmatpush.bf16.xpose.msra.mxu0 0
  %701 = vmatpush.bf16.xpose.msra.mxu0 0
  %702 = vmatpush.bf16.xpose.msra.mxu0 %v694
  %703 = vmatpush.bf16.xpose.msra.mxu0 %v691
  %704 = vmatmul.bf16.gmra.mxu0 %v685
  %v705 = vpop.f32.mrf.mxu0
  %v706 = vadd.f32 0.0, %v705
  %v707 = vpop.f32.mrf.mxu0
  %v708 = vadd.f32 0.0, %v707
  %709 = vmatmul.bf16.gmra.mxu0 %v688
  %v710 = vpop.f32.mrf.mxu0
  %v711 = vadd.f32 0.0, %v710
  %v712 = vpop.f32.mrf.mxu0
  %v713 = vadd.f32 0.0, %v712
  %714 = vdwg.mxu0
  %v715 = vsel %vm112, %v589, -inf
  %716 = vmax.xlane.f32.xlu0 %v715
  %v717 = vpop.xlane.xlu0 %716
  %v718 = vsel %vm112, %v591, -inf
  %719 = vmax.xlane.f32.xlu0 %v718
  %v720 = vpop.xlane.xlu0 %719
  %v721 = vsel %vm112, %v594, -inf
  %722 = vmax.xlane.f32.xlu0 %v721
  %v723 = vpop.xlane.xlu0 %722
  %v724 = vsel %vm112, %v596, -inf
  %725 = vmax.xlane.f32.xlu0 %v724
  %v726 = vpop.xlane.xlu0 %725
  %v727 = vsel %vm112, %v628, -inf
  %728 = vmax.xlane.f32.xlu0 %v727
  %v729 = vpop.xlane.xlu0 %728
  %v730 = vsel %vm112, %v630, -inf
  %731 = vmax.xlane.f32.xlu0 %v730
  %v732 = vpop.xlane.xlu0 %731
  %v733 = vsel %vm112, %v633, -inf
  %734 = vmax.xlane.f32.xlu0 %v733
  %v735 = vpop.xlane.xlu0 %734
  %v736 = vsel %vm112, %v635, -inf
  %737 = vmax.xlane.f32.xlu0 %v736
  %v738 = vpop.xlane.xlu0 %737
  %v739 = vsel %vm112, %v667, -inf
  %740 = vmax.xlane.f32.xlu0 %v739
  %v741 = vpop.xlane.xlu0 %740
  %v742 = vsel %vm112, %v669, -inf
  %743 = vmax.xlane.f32.xlu0 %v742
  %v744 = vpop.xlane.xlu0 %743
  %v745 = vsel %vm112, %v672, -inf
  %746 = vmax.xlane.f32.xlu0 %v745
  %v747 = vpop.xlane.xlu0 %746
  %v748 = vsel %vm112, %v674, -inf
  %749 = vmax.xlane.f32.xlu0 %v748
  %v750 = vpop.xlane.xlu0 %749
  %v751 = vsel %vm112, %v706, -inf
  %752 = vmax.xlane.f32.xlu0 %v751
  %v753 = vpop.xlane.xlu0 %752
  %v754 = vsel %vm112, %v708, -inf
  %755 = vmax.xlane.f32.xlu0 %v754
  %v756 = vpop.xlane.xlu0 %755
  %v757 = vsel %vm112, %v711, -inf
  %758 = vmax.xlane.f32.xlu0 %v757
  %v759 = vpop.xlane.xlu0 %758
  %v760 = vsel %vm112, %v713, -inf
  %761 = vmax.xlane.f32.xlu0 %v760
  %v762 = vpop.xlane.xlu0 %761
  %v763 = vsub.f32 %v589, %v717
  %v764 = vsub.f32 %v591, %v720
  %v765 = vsub.f32 %v594, %v723
  %v766 = vsub.f32 %v596, %v726
  %v767 = vsub.f32 %v628, %v729
  %v768 = vsub.f32 %v630, %v732
  %v769 = vsub.f32 %v633, %v735
  %v770 = vsub.f32 %v635, %v738
  %v771 = vsub.f32 %v667, %v741
  %v772 = vsub.f32 %v669, %v744
  %v773 = vsub.f32 %v672, %v747
  %v774 = vsub.f32 %v674, %v750
  %v775 = vsub.f32 %v706, %v753
  %v776 = vsub.f32 %v708, %v756
  %v777 = vsub.f32 %v711, %v759
  %v778 = vsub.f32 %v713, %v762
  %v779 = vmul.f32 %v763, 1.442695
  %v780 = vpow.pop %v779
  %v781 = vmul.f32 %v764, 1.442695
  %v782 = vpow.pop %v781
  %v783 = vmul.f32 %v765, 1.442695
  %v784 = vpow.pop %v783
  %v785 = vmul.f32 %v766, 1.442695
  %v786 = vpow.pop %v785
  %v787 = vmul.f32 %v767, 1.442695
  %v788 = vpow.pop %v787
  %v789 = vmul.f32 %v768, 1.442695
  %v790 = vpow.pop %v789
  %v791 = vmul.f32 %v769, 1.442695
  %v792 = vpow.pop %v791
  %v793 = vmul.f32 %v770, 1.442695
  %v794 = vpow.pop %v793
  %v795 = vmul.f32 %v771, 1.442695
  %v796 = vpow.pop %v795
  %v797 = vmul.f32 %v772, 1.442695
  %v798 = vpow.pop %v797
  %v799 = vmul.f32 %v773, 1.442695
  %v800 = vpow.pop %v799
  %v801 = vmul.f32 %v774, 1.442695
  %v802 = vpow.pop %v801
  %v803 = vmul.f32 %v775, 1.442695
  %v804 = vpow.pop %v803
  %v805 = vmul.f32 %v776, 1.442695
  %v806 = vpow.pop %v805
  %v807 = vmul.f32 %v777, 1.442695
  %v808 = vpow.pop %v807
  %v809 = vmul.f32 %v778, 1.442695
  %v810 = vpow.pop %v809
  %v811 = vsel %vm112, %v780, 0.0
  %812 = vadd.xlane.f32.xlu0 %v811
  %v813 = vpop.xlane.xlu0 %812
  %v814 = vsel %vm112, %v782, 0.0
  %815 = vadd.xlane.f32.xlu0 %v814
  %v816 = vpop.xlane.xlu0 %815
  %v817 = vsel %vm112, %v784, 0.0
  %818 = vadd.xlane.f32.xlu0 %v817
  %v819 = vpop.xlane.xlu0 %818
  %v820 = vsel %vm112, %v786, 0.0
  %821 = vadd.xlane.f32.xlu0 %v820
  %v822 = vpop.xlane.xlu0 %821
  %v823 = vsel %vm112, %v788, 0.0
  %824 = vadd.xlane.f32.xlu0 %v823
  %v825 = vpop.xlane.xlu0 %824
  %v826 = vsel %vm112, %v790, 0.0
  %827 = vadd.xlane.f32.xlu0 %v826
  %v828 = vpop.xlane.xlu0 %827
  %v829 = vsel %vm112, %v792, 0.0
  %830 = vadd.xlane.f32.xlu0 %v829
  %v831 = vpop.xlane.xlu0 %830
  %v832 = vsel %vm112, %v794, 0.0
  %833 = vadd.xlane.f32.xlu0 %v832
  %v834 = vpop.xlane.xlu0 %833
  %v835 = vsel %vm112, %v796, 0.0
  %836 = vadd.xlane.f32.xlu0 %v835
  %v837 = vpop.xlane.xlu0 %836
  %v838 = vsel %vm112, %v798, 0.0
  %839 = vadd.xlane.f32.xlu0 %v838
  %v840 = vpop.xlane.xlu0 %839
  %v841 = vsel %vm112, %v800, 0.0
  %842 = vadd.xlane.f32.xlu0 %v841
  %v843 = vpop.xlane.xlu0 %842
  %v844 = vsel %vm112, %v802, 0.0
  %845 = vadd.xlane.f32.xlu0 %v844
  %v846 = vpop.xlane.xlu0 %845
  %v847 = vsel %vm112, %v804, 0.0
  %848 = vadd.xlane.f32.xlu0 %v847
  %v849 = vpop.xlane.xlu0 %848
  %v850 = vsel %vm112, %v806, 0.0
  %851 = vadd.xlane.f32.xlu0 %v850
  %v852 = vpop.xlane.xlu0 %851
  %v853 = vsel %vm112, %v808, 0.0
  %854 = vadd.xlane.f32.xlu0 %v853
  %v855 = vpop.xlane.xlu0 %854
  %v856 = vsel %vm112, %v810, 0.0
  %857 = vadd.xlane.f32.xlu0 %v856
  %v858 = vpop.xlane.xlu0 %857
  %v859 = vrcp.pop %v813
  %v860 = vrcp.pop %v816
  %v861 = vrcp.pop %v819
  %v862 = vrcp.pop %v822
  %v863 = vrcp.pop %v825
  %v864 = vrcp.pop %v828
  %v865 = vrcp.pop %v831
  %v866 = vrcp.pop %v834
  %v867 = vrcp.pop %v837
  %v868 = vrcp.pop %v840
  %v869 = vrcp.pop %v843
  %v870 = vrcp.pop %v846
  %v871 = vrcp.pop %v849
  %v872 = vrcp.pop %v852
  %v873 = vrcp.pop %v855
  %v874 = vrcp.pop %v858
  %v875 = vmul.f32 %v780, %v859
  %v876 = vmul.f32 %v782, %v860
  %v877 = vmul.f32 %v784, %v861
  %v878 = vmul.f32 %v786, %v862
  %v879 = vmul.f32 %v788, %v863
  %v880 = vmul.f32 %v790, %v864
  %v881 = vmul.f32 %v792, %v865
  %v882 = vmul.f32 %v794, %v866
  %v883 = vmul.f32 %v796, %v867
  %v884 = vmul.f32 %v798, %v868
  %v885 = vmul.f32 %v800, %v869
  %v886 = vmul.f32 %v802, %v870
  %v887 = vmul.f32 %v804, %v871
  %v888 = vmul.f32 %v806, %v872
  %v889 = vmul.f32 %v808, %v873
  %v890 = vmul.f32 %v810, %v874
  %v891 = vadd.f32 %v543, %v875
  %v892 = vadd.f32 %v544, %v876
  %v893 = vadd.f32 %v545, %v877
  %v894 = vadd.f32 %v546, %v878
  %v895 = vadd.f32 %v547, %v879
  %v896 = vadd.f32 %v548, %v880
  %v897 = vadd.f32 %v549, %v881
  %v898 = vadd.f32 %v550, %v882
  %v899 = vadd.f32 %v551, %v883
  %v900 = vadd.f32 %v552, %v884
  %v901 = vadd.f32 %v553, %v885
  %v902 = vadd.f32 %v554, %v886
  %v903 = vadd.f32 %v555, %v887
  %v904 = vadd.f32 %v556, %v888
  %v905 = vadd.f32 %v557, %v889
  %v906 = vadd.f32 %v558, %v890
  %907 = vrot.lane.b32.xlu0 %v210, 112
  %v908 = vpop.permute.xlu0 %907
  %909 = vrot.lane.b32.xlu0 %v211, 112
  %v910 = vpop.permute.xlu0 %909
  %911 = vrot.lane.b32.xlu0 %v210, 80
  %v912 = vpop.permute.xlu0 %911
  %913 = vrot.lane.b32.xlu0 %v211, 80
  %v914 = vpop.permute.xlu0 %913
  %v916 = vsel %vm216, %v908, 0
  %v919 = vsel %vm216, %v910, 0
  %v922 = vsel %vm216, %v912, 0
  %v925 = vsel %vm216, %v914, 0
  %927 = vmatpush.bf16.xpose.msra.mxu0 0
  %928 = vmatpush.bf16.xpose.msra.mxu0 0
  %929 = vmatpush.bf16.xpose.msra.mxu0 0
  %930 = vmatpush.bf16.xpose.msra.mxu0 0
  %931 = vmatpush.bf16.xpose.msra.mxu0 0
  %932 = vmatpush.bf16.xpose.msra.mxu0 0
  %933 = vmatpush.bf16.xpose.msra.mxu0 %v925
  %934 = vmatpush.bf16.xpose.msra.mxu0 %v922
  %935 = vmatmul.bf16.gmra.mxu0 %v916
  %v936 = vpop.f32.mrf.mxu0
  %v937 = vadd.f32 0.0, %v936
  %v938 = vpop.f32.mrf.mxu0
  %v939 = vadd.f32 0.0, %v938
  %940 = vmatmul.bf16.gmra.mxu0 %v919
  %v941 = vpop.f32.mrf.mxu0
  %v942 = vadd.f32 0.0, %v941
  %v943 = vpop.f32.mrf.mxu0
  %v944 = vadd.f32 0.0, %v943
  %945 = vdwg.mxu0
  %946 = vrot.lane.b32.xlu0 %v256, 112
  %v947 = vpop.permute.xlu0 %946
  %948 = vrot.lane.b32.xlu0 %v257, 112
  %v949 = vpop.permute.xlu0 %948
  %950 = vrot.lane.b32.xlu0 %v256, 80
  %v951 = vpop.permute.xlu0 %950
  %952 = vrot.lane.b32.xlu0 %v257, 80
  %v953 = vpop.permute.xlu0 %952
  %v955 = vsel %vm216, %v947, 0
  %v958 = vsel %vm216, %v949, 0
  %v961 = vsel %vm216, %v951, 0
  %v964 = vsel %vm216, %v953, 0
  %966 = vmatpush.bf16.xpose.msra.mxu0 0
  %967 = vmatpush.bf16.xpose.msra.mxu0 0
  %968 = vmatpush.bf16.xpose.msra.mxu0 0
  %969 = vmatpush.bf16.xpose.msra.mxu0 0
  %970 = vmatpush.bf16.xpose.msra.mxu0 0
  %971 = vmatpush.bf16.xpose.msra.mxu0 0
  %972 = vmatpush.bf16.xpose.msra.mxu0 %v964
  %973 = vmatpush.bf16.xpose.msra.mxu0 %v961
  %974 = vmatmul.bf16.gmra.mxu0 %v955
  %v975 = vpop.f32.mrf.mxu0
  %v976 = vadd.f32 0.0, %v975
  %v977 = vpop.f32.mrf.mxu0
  %v978 = vadd.f32 0.0, %v977
  %979 = vmatmul.bf16.gmra.mxu0 %v958
  %v980 = vpop.f32.mrf.mxu0
  %v981 = vadd.f32 0.0, %v980
  %v982 = vpop.f32.mrf.mxu0
  %v983 = vadd.f32 0.0, %v982
  %984 = vdwg.mxu0
  %985 = vrot.lane.b32.xlu0 %v301, 112
  %v986 = vpop.permute.xlu0 %985
  %987 = vrot.lane.b32.xlu0 %v302, 112
  %v988 = vpop.permute.xlu0 %987
  %989 = vrot.lane.b32.xlu0 %v301, 80
  %v990 = vpop.permute.xlu0 %989
  %991 = vrot.lane.b32.xlu0 %v302, 80
  %v992 = vpop.permute.xlu0 %991
  %v994 = vsel %vm216, %v986, 0
  %v997 = vsel %vm216, %v988, 0
  %v1000 = vsel %vm216, %v990, 0
  %v1003 = vsel %vm216, %v992, 0
  %1005 = vmatpush.bf16.xpose.msra.mxu0 0
  %1006 = vmatpush.bf16.xpose.msra.mxu0 0
  %1007 = vmatpush.bf16.xpose.msra.mxu0 0
  %1008 = vmatpush.bf16.xpose.msra.mxu0 0
  %1009 = vmatpush.bf16.xpose.msra.mxu0 0
  %1010 = vmatpush.bf16.xpose.msra.mxu0 0
  %1011 = vmatpush.bf16.xpose.msra.mxu0 %v1003
  %1012 = vmatpush.bf16.xpose.msra.mxu0 %v1000
  %1013 = vmatmul.bf16.gmra.mxu0 %v994
  %v1014 = vpop.f32.mrf.mxu0
  %v1015 = vadd.f32 0.0, %v1014
  %v1016 = vpop.f32.mrf.mxu0
  %v1017 = vadd.f32 0.0, %v1016
  %1018 = vmatmul.bf16.gmra.mxu0 %v997
  %v1019 = vpop.f32.mrf.mxu0
  %v1020 = vadd.f32 0.0, %v1019
  %v1021 = vpop.f32.mrf.mxu0
  %v1022 = vadd.f32 0.0, %v1021
  %1023 = vdwg.mxu0
  %1024 = vrot.lane.b32.xlu0 %v346, 112
  %v1025 = vpop.permute.xlu0 %1024
  %1026 = vrot.lane.b32.xlu0 %v347, 112
  %v1027 = vpop.permute.xlu0 %1026
  %1028 = vrot.lane.b32.xlu0 %v346, 80
  %v1029 = vpop.permute.xlu0 %1028
  %1030 = vrot.lane.b32.xlu0 %v347, 80
  %v1031 = vpop.permute.xlu0 %1030
  %v1033 = vsel %vm216, %v1025, 0
  %v1036 = vsel %vm216, %v1027, 0
  %v1039 = vsel %vm216, %v1029, 0
  %v1042 = vsel %vm216, %v1031, 0
  %1044 = vmatpush.bf16.xpose.msra.mxu0 0
  %1045 = vmatpush.bf16.xpose.msra.mxu0 0
  %1046 = vmatpush.bf16.xpose.msra.mxu0 0
  %1047 = vmatpush.bf16.xpose.msra.mxu0 0
  %1048 = vmatpush.bf16.xpose.msra.mxu0 0
  %1049 = vmatpush.bf16.xpose.msra.mxu0 0
  %1050 = vmatpush.bf16.xpose.msra.mxu0 %v1042
  %1051 = vmatpush.bf16.xpose.msra.mxu0 %v1039
  %1052 = vmatmul.bf16.gmra.mxu0 %v1033
  %v1053 = vpop.f32.mrf.mxu0
  %v1054 = vadd.f32 0.0, %v1053
  %v1055 = vpop.f32.mrf.mxu0
  %v1056 = vadd.f32 0.0, %v1055
  %1057 = vmatmul.bf16.gmra.mxu0 %v1036
  %v1058 = vpop.f32.mrf.mxu0
  %v1059 = vadd.f32 0.0, %v1058
  %v1060 = vpop.f32.mrf.mxu0
  %v1061 = vadd.f32 0.0, %v1060
  %1062 = vdwg.mxu0
  %v1063 = vsel %vm112, %v937, -inf
  %1064 = vmax.xlane.f32.xlu0 %v1063
  %v1065 = vpop.xlane.xlu0 %1064
  %v1066 = vsel %vm112, %v939, -inf
  %1067 = vmax.xlane.f32.xlu0 %v1066
  %v1068 = vpop.xlane.xlu0 %1067
  %v1069 = vsel %vm112, %v942, -inf
  %1070 = vmax.xlane.f32.xlu0 %v1069
  %v1071 = vpop.xlane.xlu0 %1070
  %v1072 = vsel %vm112, %v944, -inf
  %1073 = vmax.xlane.f32.xlu0 %v1072
  %v1074 = vpop.xlane.xlu0 %1073
  %v1075 = vsel %vm112, %v976, -inf
  %1076 = vmax.xlane.f32.xlu0 %v1075
  %v1077 = vpop.xlane.xlu0 %1076
  %v1078 = vsel %vm112, %v978, -inf
  %1079 = vmax.xlane.f32.xlu0 %v1078
  %v1080 = vpop.xlane.xlu0 %1079
  %v1081 = vsel %vm112, %v981, -inf
  %1082 = vmax.xlane.f32.xlu0 %v1081
  %v1083 = vpop.xlane.xlu0 %1082
  %v1084 = vsel %vm112, %v983, -inf
  %1085 = vmax.xlane.f32.xlu0 %v1084
  %v1086 = vpop.xlane.xlu0 %1085
  %v1087 = vsel %vm112, %v1015, -inf
  %1088 = vmax.xlane.f32.xlu0 %v1087
  %v1089 = vpop.xlane.xlu0 %1088
  %v1090 = vsel %vm112, %v1017, -inf
  %1091 = vmax.xlane.f32.xlu0 %v1090
  %v1092 = vpop.xlane.xlu0 %1091
  %v1093 = vsel %vm112, %v1020, -inf
  %1094 = vmax.xlane.f32.xlu0 %v1093
  %v1095 = vpop.xlane.xlu0 %1094
  %v1096 = vsel %vm112, %v1022, -inf
  %1097 = vmax.xlane.f32.xlu0 %v1096
  %v1098 = vpop.xlane.xlu0 %1097
  %v1099 = vsel %vm112, %v1054, -inf
  %1100 = vmax.xlane.f32.xlu0 %v1099
  %v1101 = vpop.xlane.xlu0 %1100
  %v1102 = vsel %vm112, %v1056, -inf
  %1103 = vmax.xlane.f32.xlu0 %v1102
  %v1104 = vpop.xlane.xlu0 %1103
  %v1105 = vsel %vm112, %v1059, -inf
  %1106 = vmax.xlane.f32.xlu0 %v1105
  %v1107 = vpop.xlane.xlu0 %1106
  %v1108 = vsel %vm112, %v1061, -inf
  %1109 = vmax.xlane.f32.xlu0 %v1108
  %v1110 = vpop.xlane.xlu0 %1109
  %v1111 = vsub.f32 %v937, %v1065
  %v1112 = vsub.f32 %v939, %v1068
  %v1113 = vsub.f32 %v942, %v1071
  %v1114 = vsub.f32 %v944, %v1074
  %v1115 = vsub.f32 %v976, %v1077
  %v1116 = vsub.f32 %v978, %v1080
  %v1117 = vsub.f32 %v981, %v1083
  %v1118 = vsub.f32 %v983, %v1086
  %v1119 = vsub.f32 %v1015, %v1089
  %v1120 = vsub.f32 %v1017, %v1092
  %v1121 = vsub.f32 %v1020, %v1095
  %v1122 = vsub.f32 %v1022, %v1098
  %v1123 = vsub.f32 %v1054, %v1101
  %v1124 = vsub.f32 %v1056, %v1104
  %v1125 = vsub.f32 %v1059, %v1107
  %v1126 = vsub.f32 %v1061, %v1110
  %v1127 = vmul.f32 %v1111, 1.442695
  %v1128 = vpow.pop %v1127
  %v1129 = vmul.f32 %v1112, 1.442695
  %v1130 = vpow.pop %v1129
  %v1131 = vmul.f32 %v1113, 1.442695
  %v1132 = vpow.pop %v1131
  %v1133 = vmul.f32 %v1114, 1.442695
  %v1134 = vpow.pop %v1133
  %v1135 = vmul.f32 %v1115, 1.442695
  %v1136 = vpow.pop %v1135
  %v1137 = vmul.f32 %v1116, 1.442695
  %v1138 = vpow.pop %v1137
  %v1139 = vmul.f32 %v1117, 1.442695
  %v1140 = vpow.pop %v1139
  %v1141 = vmul.f32 %v1118, 1.442695
  %v1142 = vpow.pop %v1141
  %v1143 = vmul.f32 %v1119, 1.442695
  %v1144 = vpow.pop %v1143
  %v1145 = vmul.f32 %v1120, 1.442695
  %v1146 = vpow.pop %v1145
  %v1147 = vmul.f32 %v1121, 1.442695
  %v1148 = vpow.pop %v1147
  %v1149 = vmul.f32 %v1122, 1.442695
  %v1150 = vpow.pop %v1149
  %v1151 = vmul.f32 %v1123, 1.442695
  %v1152 = vpow.pop %v1151
  %v1153 = vmul.f32 %v1124, 1.442695
  %v1154 = vpow.pop %v1153
  %v1155 = vmul.f32 %v1125, 1.442695
  %v1156 = vpow.pop %v1155
  %v1157 = vmul.f32 %v1126, 1.442695
  %v1158 = vpow.pop %v1157
  %v1159 = vsel %vm112, %v1128, 0.0
  %1160 = vadd.xlane.f32.xlu0 %v1159
  %v1161 = vpop.xlane.xlu0 %1160
  %v1162 = vsel %vm112, %v1130, 0.0
  %1163 = vadd.xlane.f32.xlu0 %v1162
  %v1164 = vpop.xlane.xlu0 %1163
  %v1165 = vsel %vm112, %v1132, 0.0
  %1166 = vadd.xlane.f32.xlu0 %v1165
  %v1167 = vpop.xlane.xlu0 %1166
  %v1168 = vsel %vm112, %v1134, 0.0
  %1169 = vadd.xlane.f32.xlu0 %v1168
  %v1170 = vpop.xlane.xlu0 %1169
  %v1171 = vsel %vm112, %v1136, 0.0
  %1172 = vadd.xlane.f32.xlu0 %v1171
  %v1173 = vpop.xlane.xlu0 %1172
  %v1174 = vsel %vm112, %v1138, 0.0
  %1175 = vadd.xlane.f32.xlu0 %v1174
  %v1176 = vpop.xlane.xlu0 %1175
  %v1177 = vsel %vm112, %v1140, 0.0
  %1178 = vadd.xlane.f32.xlu0 %v1177
  %v1179 = vpop.xlane.xlu0 %1178
  %v1180 = vsel %vm112, %v1142, 0.0
  %1181 = vadd.xlane.f32.xlu0 %v1180
  %v1182 = vpop.xlane.xlu0 %1181
  %v1183 = vsel %vm112, %v1144, 0.0
  %1184 = vadd.xlane.f32.xlu0 %v1183
  %v1185 = vpop.xlane.xlu0 %1184
  %v1186 = vsel %vm112, %v1146, 0.0
  %1187 = vadd.xlane.f32.xlu0 %v1186
  %v1188 = vpop.xlane.xlu0 %1187
  %v1189 = vsel %vm112, %v1148, 0.0
  %1190 = vadd.xlane.f32.xlu0 %v1189
  %v1191 = vpop.xlane.xlu0 %1190
  %v1192 = vsel %vm112, %v1150, 0.0
  %1193 = vadd.xlane.f32.xlu0 %v1192
  %v1194 = vpop.xlane.xlu0 %1193
  %v1195 = vsel %vm112, %v1152, 0.0
  %1196 = vadd.xlane.f32.xlu0 %v1195
  %v1197 = vpop.xlane.xlu0 %1196
  %v1198 = vsel %vm112, %v1154, 0.0
  %1199 = vadd.xlane.f32.xlu0 %v1198
  %v1200 = vpop.xlane.xlu0 %1199
  %v1201 = vsel %vm112, %v1156, 0.0
  %1202 = vadd.xlane.f32.xlu0 %v1201
  %v1203 = vpop.xlane.xlu0 %1202
  %v1204 = vsel %vm112, %v1158, 0.0
  %1205 = vadd.xlane.f32.xlu0 %v1204
  %v1206 = vpop.xlane.xlu0 %1205
  %v1207 = vrcp.pop %v1161
  %v1208 = vrcp.pop %v1164
  %v1209 = vrcp.pop %v1167
  %v1210 = vrcp.pop %v1170
  %v1211 = vrcp.pop %v1173
  %v1212 = vrcp.pop %v1176
  %v1213 = vrcp.pop %v1179
  %v1214 = vrcp.pop %v1182
  %v1215 = vrcp.pop %v1185
  %v1216 = vrcp.pop %v1188
  %v1217 = vrcp.pop %v1191
  %v1218 = vrcp.pop %v1194
  %v1219 = vrcp.pop %v1197
  %v1220 = vrcp.pop %v1200
  %v1221 = vrcp.pop %v1203
  %v1222 = vrcp.pop %v1206
  %v1223 = vmul.f32 %v1128, %v1207
  %v1224 = vmul.f32 %v1130, %v1208
  %v1225 = vmul.f32 %v1132, %v1209
  %v1226 = vmul.f32 %v1134, %v1210
  %v1227 = vmul.f32 %v1136, %v1211
  %v1228 = vmul.f32 %v1138, %v1212
  %v1229 = vmul.f32 %v1140, %v1213
  %v1230 = vmul.f32 %v1142, %v1214
  %v1231 = vmul.f32 %v1144, %v1215
  %v1232 = vmul.f32 %v1146, %v1216
  %v1233 = vmul.f32 %v1148, %v1217
  %v1234 = vmul.f32 %v1150, %v1218
  %v1235 = vmul.f32 %v1152, %v1219
  %v1236 = vmul.f32 %v1154, %v1220
  %v1237 = vmul.f32 %v1156, %v1221
  %v1238 = vmul.f32 %v1158, %v1222
  %v1239 = vadd.f32 %v891, %v1223
  %v1240 = vadd.f32 %v892, %v1224
  %v1241 = vadd.f32 %v893, %v1225
  %v1242 = vadd.f32 %v894, %v1226
  %v1243 = vadd.f32 %v895, %v1227
  %v1244 = vadd.f32 %v896, %v1228
  %v1245 = vadd.f32 %v897, %v1229
  %v1246 = vadd.f32 %v898, %v1230
  %v1247 = vadd.f32 %v899, %v1231
  %v1248 = vadd.f32 %v900, %v1232
  %v1249 = vadd.f32 %v901, %v1233
  %v1250 = vadd.f32 %v902, %v1234
  %v1251 = vadd.f32 %v903, %v1235
  %v1252 = vadd.f32 %v904, %v1236
  %v1253 = vadd.f32 %v905, %v1237
  %v1254 = vadd.f32 %v906, %v1238
  %1255 = vrot.lane.b32.xlu0 %v210, 104
  %v1256 = vpop.permute.xlu0 %1255
  %1257 = vrot.lane.b32.xlu0 %v211, 104
  %v1258 = vpop.permute.xlu0 %1257
  %1259 = vrot.lane.b32.xlu0 %v210, 72
  %v1260 = vpop.permute.xlu0 %1259
  %1261 = vrot.lane.b32.xlu0 %v211, 72
  %v1262 = vpop.permute.xlu0 %1261
  %v1264 = vsel %vm216, %v1256, 0
  %v1267 = vsel %vm216, %v1258, 0
  %v1270 = vsel %vm216, %v1260, 0
  %v1273 = vsel %vm216, %v1262, 0
  %1275 = vmatpush.bf16.xpose.msra.mxu0 0
  %1276 = vmatpush.bf16.xpose.msra.mxu0 0
  %1277 = vmatpush.bf16.xpose.msra.mxu0 0
  %1278 = vmatpush.bf16.xpose.msra.mxu0 0
  %1279 = vmatpush.bf16.xpose.msra.mxu0 0
  %1280 = vmatpush.bf16.xpose.msra.mxu0 0
  %1281 = vmatpush.bf16.xpose.msra.mxu0 %v1273
  %1282 = vmatpush.bf16.xpose.msra.mxu0 %v1270
  %1283 = vmatmul.bf16.gmra.mxu0 %v1264
  %v1284 = vpop.f32.mrf.mxu0
  %v1285 = vadd.f32 0.0, %v1284
  %v1286 = vpop.f32.mrf.mxu0
  %v1287 = vadd.f32 0.0, %v1286
  %1288 = vmatmul.bf16.gmra.mxu0 %v1267
  %v1289 = vpop.f32.mrf.mxu0
  %v1290 = vadd.f32 0.0, %v1289
  %v1291 = vpop.f32.mrf.mxu0
  %v1292 = vadd.f32 0.0, %v1291
  %1293 = vdwg.mxu0
  %1294 = vrot.lane.b32.xlu0 %v256, 104
  %v1295 = vpop.permute.xlu0 %1294
  %1296 = vrot.lane.b32.xlu0 %v257, 104
  %v1297 = vpop.permute.xlu0 %1296
  %1298 = vrot.lane.b32.xlu0 %v256, 72
  %v1299 = vpop.permute.xlu0 %1298
  %1300 = vrot.lane.b32.xlu0 %v257, 72
  %v1301 = vpop.permute.xlu0 %1300
  %v1303 = vsel %vm216, %v1295, 0
  %v1306 = vsel %vm216, %v1297, 0
  %v1309 = vsel %vm216, %v1299, 0
  %v1312 = vsel %vm216, %v1301, 0
  %1314 = vmatpush.bf16.xpose.msra.mxu0 0
  %1315 = vmatpush.bf16.xpose.msra.mxu0 0
  %1316 = vmatpush.bf16.xpose.msra.mxu0 0
  %1317 = vmatpush.bf16.xpose.msra.mxu0 0
  %1318 = vmatpush.bf16.xpose.msra.mxu0 0
  %1319 = vmatpush.bf16.xpose.msra.mxu0 0
  %1320 = vmatpush.bf16.xpose.msra.mxu0 %v1312
  %1321 = vmatpush.bf16.xpose.msra.mxu0 %v1309
  %1322 = vmatmul.bf16.gmra.mxu0 %v1303
  %v1323 = vpop.f32.mrf.mxu0
  %v1324 = vadd.f32 0.0, %v1323
  %v1325 = vpop.f32.mrf.mxu0
  %v1326 = vadd.f32 0.0, %v1325
  %1327 = vmatmul.bf16.gmra.mxu0 %v1306
  %v1328 = vpop.f32.mrf.mxu0
  %v1329 = vadd.f32 0.0, %v1328
  %v1330 = vpop.f32.mrf.mxu0
  %v1331 = vadd.f32 0.0, %v1330
  %1332 = vdwg.mxu0
  %1333 = vrot.lane.b32.xlu0 %v301, 104
  %v1334 = vpop.permute.xlu0 %1333
  %1335 = vrot.lane.b32.xlu0 %v302, 104
  %v1336 = vpop.permute.xlu0 %1335
  %1337 = vrot.lane.b32.xlu0 %v301, 72
  %v1338 = vpop.permute.xlu0 %1337
  %1339 = vrot.lane.b32.xlu0 %v302, 72
  %v1340 = vpop.permute.xlu0 %1339
  %v1342 = vsel %vm216, %v1334, 0
  %v1345 = vsel %vm216, %v1336, 0
  %v1348 = vsel %vm216, %v1338, 0
  %v1351 = vsel %vm216, %v1340, 0
  %1353 = vmatpush.bf16.xpose.msra.mxu0 0
  %1354 = vmatpush.bf16.xpose.msra.mxu0 0
  %1355 = vmatpush.bf16.xpose.msra.mxu0 0
  %1356 = vmatpush.bf16.xpose.msra.mxu0 0
  %1357 = vmatpush.bf16.xpose.msra.mxu0 0
  %1358 = vmatpush.bf16.xpose.msra.mxu0 0
  %1359 = vmatpush.bf16.xpose.msra.mxu0 %v1351
  %1360 = vmatpush.bf16.xpose.msra.mxu0 %v1348
  %1361 = vmatmul.bf16.gmra.mxu0 %v1342
  %v1362 = vpop.f32.mrf.mxu0
  %v1363 = vadd.f32 0.0, %v1362
  %v1364 = vpop.f32.mrf.mxu0
  %v1365 = vadd.f32 0.0, %v1364
  %1366 = vmatmul.bf16.gmra.mxu0 %v1345
  %v1367 = vpop.f32.mrf.mxu0
  %v1368 = vadd.f32 0.0, %v1367
  %v1369 = vpop.f32.mrf.mxu0
  %v1370 = vadd.f32 0.0, %v1369
  %1371 = vdwg.mxu0
  %1372 = vrot.lane.b32.xlu0 %v346, 104
  %v1373 = vpop.permute.xlu0 %1372
  %1374 = vrot.lane.b32.xlu0 %v347, 104
  %v1375 = vpop.permute.xlu0 %1374
  %1376 = vrot.lane.b32.xlu0 %v346, 72
  %v1377 = vpop.permute.xlu0 %1376
  %1378 = vrot.lane.b32.xlu0 %v347, 72
  %v1379 = vpop.permute.xlu0 %1378
  %v1381 = vsel %vm216, %v1373, 0
  %v1384 = vsel %vm216, %v1375, 0
  %v1387 = vsel %vm216, %v1377, 0
  %v1390 = vsel %vm216, %v1379, 0
  %1392 = vmatpush.bf16.xpose.msra.mxu0 0
  %1393 = vmatpush.bf16.xpose.msra.mxu0 0
  %1394 = vmatpush.bf16.xpose.msra.mxu0 0
  %1395 = vmatpush.bf16.xpose.msra.mxu0 0
  %1396 = vmatpush.bf16.xpose.msra.mxu0 0
  %1397 = vmatpush.bf16.xpose.msra.mxu0 0
  %1398 = vmatpush.bf16.xpose.msra.mxu0 %v1390
  %1399 = vmatpush.bf16.xpose.msra.mxu0 %v1387
  %1400 = vmatmul.bf16.gmra.mxu0 %v1381
  %v1401 = vpop.f32.mrf.mxu0
  %v1402 = vadd.f32 0.0, %v1401
  %v1403 = vpop.f32.mrf.mxu0
  %v1404 = vadd.f32 0.0, %v1403
  %1405 = vmatmul.bf16.gmra.mxu0 %v1384
  %v1406 = vpop.f32.mrf.mxu0
  %v1407 = vadd.f32 0.0, %v1406
  %v1408 = vpop.f32.mrf.mxu0
  %v1409 = vadd.f32 0.0, %v1408
  %1410 = vdwg.mxu0
  %v1411 = vsel %vm112, %v1285, -inf
  %1412 = vmax.xlane.f32.xlu0 %v1411
  %v1413 = vpop.xlane.xlu0 %1412
  %v1414 = vsel %vm112, %v1287, -inf
  %1415 = vmax.xlane.f32.xlu0 %v1414
  %v1416 = vpop.xlane.xlu0 %1415
  %v1417 = vsel %vm112, %v1290, -inf
  %1418 = vmax.xlane.f32.xlu0 %v1417
  %v1419 = vpop.xlane.xlu0 %1418
  %v1420 = vsel %vm112, %v1292, -inf
  %1421 = vmax.xlane.f32.xlu0 %v1420
  %v1422 = vpop.xlane.xlu0 %1421
  %v1423 = vsel %vm112, %v1324, -inf
  %1424 = vmax.xlane.f32.xlu0 %v1423
  %v1425 = vpop.xlane.xlu0 %1424
  %v1426 = vsel %vm112, %v1326, -inf
  %1427 = vmax.xlane.f32.xlu0 %v1426
  %v1428 = vpop.xlane.xlu0 %1427
  %v1429 = vsel %vm112, %v1329, -inf
  %1430 = vmax.xlane.f32.xlu0 %v1429
  %v1431 = vpop.xlane.xlu0 %1430
  %v1432 = vsel %vm112, %v1331, -inf
  %1433 = vmax.xlane.f32.xlu0 %v1432
  %v1434 = vpop.xlane.xlu0 %1433
  %v1435 = vsel %vm112, %v1363, -inf
  %1436 = vmax.xlane.f32.xlu0 %v1435
  %v1437 = vpop.xlane.xlu0 %1436
  %v1438 = vsel %vm112, %v1365, -inf
  %1439 = vmax.xlane.f32.xlu0 %v1438
  %v1440 = vpop.xlane.xlu0 %1439
  %v1441 = vsel %vm112, %v1368, -inf
  %1442 = vmax.xlane.f32.xlu0 %v1441
  %v1443 = vpop.xlane.xlu0 %1442
  %v1444 = vsel %vm112, %v1370, -inf
  %1445 = vmax.xlane.f32.xlu0 %v1444
  %v1446 = vpop.xlane.xlu0 %1445
  %v1447 = vsel %vm112, %v1402, -inf
  %1448 = vmax.xlane.f32.xlu0 %v1447
  %v1449 = vpop.xlane.xlu0 %1448
  %v1450 = vsel %vm112, %v1404, -inf
  %1451 = vmax.xlane.f32.xlu0 %v1450
  %v1452 = vpop.xlane.xlu0 %1451
  %v1453 = vsel %vm112, %v1407, -inf
  %1454 = vmax.xlane.f32.xlu0 %v1453
  %v1455 = vpop.xlane.xlu0 %1454
  %v1456 = vsel %vm112, %v1409, -inf
  %1457 = vmax.xlane.f32.xlu0 %v1456
  %v1458 = vpop.xlane.xlu0 %1457
  %v1459 = vsub.f32 %v1285, %v1413
  %v1460 = vsub.f32 %v1287, %v1416
  %v1461 = vsub.f32 %v1290, %v1419
  %v1462 = vsub.f32 %v1292, %v1422
  %v1463 = vsub.f32 %v1324, %v1425
  %v1464 = vsub.f32 %v1326, %v1428
  %v1465 = vsub.f32 %v1329, %v1431
  %v1466 = vsub.f32 %v1331, %v1434
  %v1467 = vsub.f32 %v1363, %v1437
  %v1468 = vsub.f32 %v1365, %v1440
  %v1469 = vsub.f32 %v1368, %v1443
  %v1470 = vsub.f32 %v1370, %v1446
  %v1471 = vsub.f32 %v1402, %v1449
  %v1472 = vsub.f32 %v1404, %v1452
  %v1473 = vsub.f32 %v1407, %v1455
  %v1474 = vsub.f32 %v1409, %v1458
  %v1475 = vmul.f32 %v1459, 1.442695
  %v1476 = vpow.pop %v1475
  %v1477 = vmul.f32 %v1460, 1.442695
  %v1478 = vpow.pop %v1477
  %v1479 = vmul.f32 %v1461, 1.442695
  %v1480 = vpow.pop %v1479
  %v1481 = vmul.f32 %v1462, 1.442695
  %v1482 = vpow.pop %v1481
  %v1483 = vmul.f32 %v1463, 1.442695
  %v1484 = vpow.pop %v1483
  %v1485 = vmul.f32 %v1464, 1.442695
  %v1486 = vpow.pop %v1485
  %v1487 = vmul.f32 %v1465, 1.442695
  %v1488 = vpow.pop %v1487
  %v1489 = vmul.f32 %v1466, 1.442695
  %v1490 = vpow.pop %v1489
  %v1491 = vmul.f32 %v1467, 1.442695
  %v1492 = vpow.pop %v1491
  %v1493 = vmul.f32 %v1468, 1.442695
  %v1494 = vpow.pop %v1493
  %v1495 = vmul.f32 %v1469, 1.442695
  %v1496 = vpow.pop %v1495
  %v1497 = vmul.f32 %v1470, 1.442695
  %v1498 = vpow.pop %v1497
  %v1499 = vmul.f32 %v1471, 1.442695
  %v1500 = vpow.pop %v1499
  %v1501 = vmul.f32 %v1472, 1.442695
  %v1502 = vpow.pop %v1501
  %v1503 = vmul.f32 %v1473, 1.442695
  %v1504 = vpow.pop %v1503
  %v1505 = vmul.f32 %v1474, 1.442695
  %v1506 = vpow.pop %v1505
  %v1507 = vsel %vm112, %v1476, 0.0
  %1508 = vadd.xlane.f32.xlu0 %v1507
  %v1509 = vpop.xlane.xlu0 %1508
  %v1510 = vsel %vm112, %v1478, 0.0
  %1511 = vadd.xlane.f32.xlu0 %v1510
  %v1512 = vpop.xlane.xlu0 %1511
  %v1513 = vsel %vm112, %v1480, 0.0
  %1514 = vadd.xlane.f32.xlu0 %v1513
  %v1515 = vpop.xlane.xlu0 %1514
  %v1516 = vsel %vm112, %v1482, 0.0
  %1517 = vadd.xlane.f32.xlu0 %v1516
  %v1518 = vpop.xlane.xlu0 %1517
  %v1519 = vsel %vm112, %v1484, 0.0
  %1520 = vadd.xlane.f32.xlu0 %v1519
  %v1521 = vpop.xlane.xlu0 %1520
  %v1522 = vsel %vm112, %v1486, 0.0
  %1523 = vadd.xlane.f32.xlu0 %v1522
  %v1524 = vpop.xlane.xlu0 %1523
  %v1525 = vsel %vm112, %v1488, 0.0
  %1526 = vadd.xlane.f32.xlu0 %v1525
  %v1527 = vpop.xlane.xlu0 %1526
  %v1528 = vsel %vm112, %v1490, 0.0
  %1529 = vadd.xlane.f32.xlu0 %v1528
  %v1530 = vpop.xlane.xlu0 %1529
  %v1531 = vsel %vm112, %v1492, 0.0
  %1532 = vadd.xlane.f32.xlu0 %v1531
  %v1533 = vpop.xlane.xlu0 %1532
  %v1534 = vsel %vm112, %v1494, 0.0
  %1535 = vadd.xlane.f32.xlu0 %v1534
  %v1536 = vpop.xlane.xlu0 %1535
  %v1537 = vsel %vm112, %v1496, 0.0
  %1538 = vadd.xlane.f32.xlu0 %v1537
  %v1539 = vpop.xlane.xlu0 %1538
  %v1540 = vsel %vm112, %v1498, 0.0
  %1541 = vadd.xlane.f32.xlu0 %v1540
  %v1542 = vpop.xlane.xlu0 %1541
  %v1543 = vsel %vm112, %v1500, 0.0
  %1544 = vadd.xlane.f32.xlu0 %v1543
  %v1545 = vpop.xlane.xlu0 %1544
  %v1546 = vsel %vm112, %v1502, 0.0
  %1547 = vadd.xlane.f32.xlu0 %v1546
  %v1548 = vpop.xlane.xlu0 %1547
  %v1549 = vsel %vm112, %v1504, 0.0
  %1550 = vadd.xlane.f32.xlu0 %v1549
  %v1551 = vpop.xlane.xlu0 %1550
  %v1552 = vsel %vm112, %v1506, 0.0
  %1553 = vadd.xlane.f32.xlu0 %v1552
  %v1554 = vpop.xlane.xlu0 %1553
  %v1555 = vrcp.pop %v1509
  %v1556 = vrcp.pop %v1512
  %v1557 = vrcp.pop %v1515
  %v1558 = vrcp.pop %v1518
  %v1559 = vrcp.pop %v1521
  %v1560 = vrcp.pop %v1524
  %v1561 = vrcp.pop %v1527
  %v1562 = vrcp.pop %v1530
  %v1563 = vrcp.pop %v1533
  %v1564 = vrcp.pop %v1536
  %v1565 = vrcp.pop %v1539
  %v1566 = vrcp.pop %v1542
  %v1567 = vrcp.pop %v1545
  %v1568 = vrcp.pop %v1548
  %v1569 = vrcp.pop %v1551
  %v1570 = vrcp.pop %v1554
  %v1571 = vmul.f32 %v1476, %v1555
  %v1572 = vmul.f32 %v1478, %v1556
  %v1573 = vmul.f32 %v1480, %v1557
  %v1574 = vmul.f32 %v1482, %v1558
  %v1575 = vmul.f32 %v1484, %v1559
  %v1576 = vmul.f32 %v1486, %v1560
  %v1577 = vmul.f32 %v1488, %v1561
  %v1578 = vmul.f32 %v1490, %v1562
  %v1579 = vmul.f32 %v1492, %v1563
  %v1580 = vmul.f32 %v1494, %v1564
  %v1581 = vmul.f32 %v1496, %v1565
  %v1582 = vmul.f32 %v1498, %v1566
  %v1583 = vmul.f32 %v1500, %v1567
  %v1584 = vmul.f32 %v1502, %v1568
  %v1585 = vmul.f32 %v1504, %v1569
  %v1586 = vmul.f32 %v1506, %v1570
  %v1587 = vadd.f32 %v1239, %v1571
  %v1588 = vadd.f32 %v1240, %v1572
  %v1589 = vadd.f32 %v1241, %v1573
  %v1590 = vadd.f32 %v1242, %v1574
  %v1591 = vadd.f32 %v1243, %v1575
  %v1592 = vadd.f32 %v1244, %v1576
  %v1593 = vadd.f32 %v1245, %v1577
  %v1594 = vadd.f32 %v1246, %v1578
  %v1595 = vadd.f32 %v1247, %v1579
  %v1596 = vadd.f32 %v1248, %v1580
  %v1597 = vadd.f32 %v1249, %v1581
  %v1598 = vadd.f32 %v1250, %v1582
  %v1599 = vadd.f32 %v1251, %v1583
  %v1600 = vadd.f32 %v1252, %v1584
  %v1601 = vadd.f32 %v1253, %v1585
  %v1602 = vadd.f32 %v1254, %v1586
  %v1603 = vmul.f32 %v1587, 0.25
  %v1604 = vmul.f32 %v1588, 0.25
  %v1605 = vmul.f32 %v1589, 0.25
  %v1606 = vmul.f32 %v1590, 0.25
  %v1607 = vmul.f32 %v1591, 0.25
  %v1608 = vmul.f32 %v1592, 0.25
  %v1609 = vmul.f32 %v1593, 0.25
  %v1610 = vmul.f32 %v1594, 0.25
  %v1611 = vmul.f32 %v1595, 0.25
  %v1612 = vmul.f32 %v1596, 0.25
  %v1613 = vmul.f32 %v1597, 0.25
  %v1614 = vmul.f32 %v1598, 0.25
  %v1615 = vmul.f32 %v1599, 0.25
  %v1616 = vmul.f32 %v1600, 0.25
  %v1617 = vmul.f32 %v1601, 0.25
  %v1618 = vmul.f32 %v1602, 0.25
  %1627 = vrot.lane.b32.xlu0 %v875, 32
  %v1628 = vpop.permute.xlu0 %1627
  %1629 = vrot.lane.b32.xlu0 %v876, 32
  %v1630 = vpop.permute.xlu0 %1629
  %1631 = vrot.lane.b32.xlu0 %v877, 32
  %v1632 = vpop.permute.xlu0 %1631
  %1633 = vrot.lane.b32.xlu0 %v878, 32
  %v1634 = vpop.permute.xlu0 %1633
  %1635 = vrot.lane.b32.xlu0 %v879, 32
  %v1636 = vpop.permute.xlu0 %1635
  %1637 = vrot.lane.b32.xlu0 %v880, 32
  %v1638 = vpop.permute.xlu0 %1637
  %1639 = vrot.lane.b32.xlu0 %v881, 32
  %v1640 = vpop.permute.xlu0 %1639
  %1641 = vrot.lane.b32.xlu0 %v882, 32
  %v1642 = vpop.permute.xlu0 %1641
  %1659 = vrot.lane.b32.xlu0 %v1223, 64
  %v1660 = vpop.permute.xlu0 %1659
  %1661 = vrot.lane.b32.xlu0 %v1224, 64
  %v1662 = vpop.permute.xlu0 %1661
  %1663 = vrot.lane.b32.xlu0 %v1225, 64
  %v1664 = vpop.permute.xlu0 %1663
  %1665 = vrot.lane.b32.xlu0 %v1226, 64
  %v1666 = vpop.permute.xlu0 %1665
  %1667 = vrot.lane.b32.xlu0 %v1227, 64
  %v1668 = vpop.permute.xlu0 %1667
  %1669 = vrot.lane.b32.xlu0 %v1228, 64
  %v1670 = vpop.permute.xlu0 %1669
  %1671 = vrot.lane.b32.xlu0 %v1229, 64
  %v1672 = vpop.permute.xlu0 %1671
  %1673 = vrot.lane.b32.xlu0 %v1230, 64
  %v1674 = vpop.permute.xlu0 %1673
  %1691 = vrot.lane.b32.xlu0 %v1571, 96
  %v1692 = vpop.permute.xlu0 %1691
  %1693 = vrot.lane.b32.xlu0 %v1572, 96
  %v1694 = vpop.permute.xlu0 %1693
  %1695 = vrot.lane.b32.xlu0 %v1573, 96
  %v1696 = vpop.permute.xlu0 %1695
  %1697 = vrot.lane.b32.xlu0 %v1574, 96
  %v1698 = vpop.permute.xlu0 %1697
  %1699 = vrot.lane.b32.xlu0 %v1575, 96
  %v1700 = vpop.permute.xlu0 %1699
  %1701 = vrot.lane.b32.xlu0 %v1576, 96
  %v1702 = vpop.permute.xlu0 %1701
  %1703 = vrot.lane.b32.xlu0 %v1577, 96
  %v1704 = vpop.permute.xlu0 %1703
  %1705 = vrot.lane.b32.xlu0 %v1578, 96
  %v1706 = vpop.permute.xlu0 %1705
  %v1715 = vsel %vm112, %v543, %v1628
  %v1716 = vsel %vm112, %v544, %v1630
  %v1717 = vsel %vm112, %v545, %v1632
  %v1718 = vsel %vm112, %v546, %v1634
  %v1719 = vsel %vm112, %v547, %v1636
  %v1720 = vsel %vm112, %v548, %v1638
  %v1721 = vsel %vm112, %v549, %v1640
  %v1722 = vsel %vm112, %v550, %v1642
  %vm1723 = vcmask 523264
  %v1724 = vsel %vm1723, %v1715, %v1660
  %v1725 = vsel %vm1723, %v1716, %v1662
  %v1726 = vsel %vm1723, %v1717, %v1664
  %v1727 = vsel %vm1723, %v1718, %v1666
  %v1728 = vsel %vm1723, %v1719, %v1668
  %v1729 = vsel %vm1723, %v1720, %v1670
  %v1730 = vsel %vm1723, %v1721, %v1672
  %v1731 = vsel %vm1723, %v1722, %v1674
  %vm1732 = vcmask 785408
  %v1733 = vsel %vm1732, %v1724, %v1692
  %v1734 = vsel %vm1732, %v1725, %v1694
  %v1735 = vsel %vm1732, %v1726, %v1696
  %v1736 = vsel %vm1732, %v1727, %v1698
  %v1737 = vsel %vm1732, %v1728, %v1700
  %v1738 = vsel %vm1732, %v1729, %v1702
  %v1739 = vsel %vm1732, %v1730, %v1704
  %v1740 = vsel %vm1732, %v1731, %v1706
  %v1741 = vpack.c.bf16 %v1733, %v1733
  %v1742 = vpack.c.bf16 %v1734, %v1734
  %v1743 = vpack.c.bf16 %v1735, %v1735
  %v1744 = vpack.c.bf16 %v1736, %v1736
  %v1745 = vpack.c.bf16 %v1737, %v1737
  %v1746 = vpack.c.bf16 %v1738, %v1738
  %v1747 = vpack.c.bf16 %v1739, %v1739
  %v1748 = vpack.c.bf16 %v1740, %v1740
  %v1753 = vld [vmem:[%s1] sm:$0xf]
  %v1754 = vld [vmem:[%s1 + $0x4] sm:$0xf]
  %v1755 = vld [vmem:[%s1 + $0x8] sm:$0xf]
  %v1756 = vld [vmem:[%s1 + $0xc] sm:$0xf]
  %v1757 = vld [vmem:[%s1 + $0x10] sm:$0xf]
  %v1758 = vld [vmem:[%s1 + $0x14] sm:$0xf]
  %v1759 = vld [vmem:[%s1 + $0x18] sm:$0xf]
  %v1760 = vld [vmem:[%s1 + $0x1c] sm:$0xf]
  %v1761 = vld [vmem:[%s1 + $0x20] sm:$0xf]
  %v1762 = vld [vmem:[%s1 + $0x24] sm:$0xf]
  %v1763 = vld [vmem:[%s1 + $0x28] sm:$0xf]
  %v1764 = vld [vmem:[%s1 + $0x2c] sm:$0xf]
  %v1765 = vld [vmem:[%s1 + $0x30] sm:$0xf]
  %v1766 = vld [vmem:[%s1 + $0x34] sm:$0xf]
  %v1767 = vld [vmem:[%s1 + $0x38] sm:$0xf]
  %v1768 = vld [vmem:[%s1 + $0x3c] sm:$0xf]
  %v1769 = vunpack.c.l.bf16 %v210
  %v1770 = vunpack.c.h.bf16 %v210
  %v1771 = vunpack.c.l.bf16 %v211
  %v1772 = vunpack.c.h.bf16 %v211
  %v1773 = vunpack.c.l.bf16 %v256
  %v1774 = vunpack.c.h.bf16 %v256
  %v1775 = vunpack.c.l.bf16 %v257
  %v1776 = vunpack.c.h.bf16 %v257
  %v1777 = vunpack.c.l.bf16 %v1753
  %v1778 = vunpack.c.l.bf16 %v1754
  %v1779 = vunpack.c.l.bf16 %v1755
  %v1780 = vunpack.c.l.bf16 %v1756
  %v1781 = vunpack.c.l.bf16 %v1757
  %v1782 = vunpack.c.l.bf16 %v1758
  %v1783 = vunpack.c.l.bf16 %v1759
  %v1784 = vunpack.c.l.bf16 %v1760
  %v1785 = vunpack.c.l.bf16 %v1761
  %v1786 = vunpack.c.l.bf16 %v1762
  %v1787 = vunpack.c.l.bf16 %v1763
  %v1788 = vunpack.c.l.bf16 %v1764
  %v1789 = vunpack.c.l.bf16 %v1765
  %v1790 = vunpack.c.l.bf16 %v1766
  %v1791 = vunpack.c.l.bf16 %v1767
  %v1792 = vunpack.c.l.bf16 %v1768
  %1809 = vrot.lane.b32.xlu0 %v1777, 64
  %v1810 = vpop.permute.xlu0 %1809
  %1811 = vrot.lane.b32.xlu0 %v1778, 64
  %v1812 = vpop.permute.xlu0 %1811
  %1813 = vrot.lane.b32.xlu0 %v1779, 64
  %v1814 = vpop.permute.xlu0 %1813
  %1815 = vrot.lane.b32.xlu0 %v1780, 64
  %v1816 = vpop.permute.xlu0 %1815
  %1817 = vrot.lane.b32.xlu0 %v1781, 64
  %v1818 = vpop.permute.xlu0 %1817
  %1819 = vrot.lane.b32.xlu0 %v1782, 64
  %v1820 = vpop.permute.xlu0 %1819
  %1821 = vrot.lane.b32.xlu0 %v1783, 64
  %v1822 = vpop.permute.xlu0 %1821
  %1823 = vrot.lane.b32.xlu0 %v1784, 64
  %v1824 = vpop.permute.xlu0 %1823
  %1825 = vrot.lane.b32.xlu0 %v1785, 64
  %v1826 = vpop.permute.xlu0 %1825
  %1827 = vrot.lane.b32.xlu0 %v1786, 64
  %v1828 = vpop.permute.xlu0 %1827
  %1829 = vrot.lane.b32.xlu0 %v1787, 64
  %v1830 = vpop.permute.xlu0 %1829
  %1831 = vrot.lane.b32.xlu0 %v1788, 64
  %v1832 = vpop.permute.xlu0 %1831
  %1833 = vrot.lane.b32.xlu0 %v1789, 64
  %v1834 = vpop.permute.xlu0 %1833
  %1835 = vrot.lane.b32.xlu0 %v1790, 64
  %v1836 = vpop.permute.xlu0 %1835
  %1837 = vrot.lane.b32.xlu0 %v1791, 64
  %v1838 = vpop.permute.xlu0 %1837
  %1839 = vrot.lane.b32.xlu0 %v1792, 64
  %v1840 = vpop.permute.xlu0 %1839
  %v1857 = vmul.f32 %v1769, %v1810
  %v1858 = vmul.f32 %v1770, %v1812
  %v1859 = vmul.f32 %v1771, %v1814
  %v1860 = vmul.f32 %v1772, %v1816
  %v1861 = vmul.f32 %v1769, %v1818
  %v1862 = vmul.f32 %v1770, %v1820
  %v1863 = vmul.f32 %v1771, %v1822
  %v1864 = vmul.f32 %v1772, %v1824
  %v1865 = vmul.f32 %v1769, %v1826
  %v1866 = vmul.f32 %v1770, %v1828
  %v1867 = vmul.f32 %v1771, %v1830
  %v1868 = vmul.f32 %v1772, %v1832
  %v1869 = vmul.f32 %v1769, %v1834
  %v1870 = vmul.f32 %v1770, %v1836
  %v1871 = vmul.f32 %v1771, %v1838
  %v1872 = vmul.f32 %v1772, %v1840
  %v1873 = vmul.f32 %v1773, %v1810
  %v1874 = vmul.f32 %v1774, %v1812
  %v1875 = vmul.f32 %v1775, %v1814
  %v1876 = vmul.f32 %v1776, %v1816
  %v1877 = vmul.f32 %v1773, %v1818
  %v1878 = vmul.f32 %v1774, %v1820
  %v1879 = vmul.f32 %v1775, %v1822
  %v1880 = vmul.f32 %v1776, %v1824
  %v1881 = vmul.f32 %v1773, %v1826
  %v1882 = vmul.f32 %v1774, %v1828
  %v1883 = vmul.f32 %v1775, %v1830
  %v1884 = vmul.f32 %v1776, %v1832
  %v1885 = vmul.f32 %v1773, %v1834
  %v1886 = vmul.f32 %v1774, %v1836
  %v1887 = vmul.f32 %v1775, %v1838
  %v1888 = vmul.f32 %v1776, %v1840
  %v1889 = vpack.c.bf16 %v1857, %v1857
  %v1890 = vpack.c.bf16 %v1858, %v1858
  %v1891 = vpack.c.bf16 %v1859, %v1859
  %v1892 = vpack.c.bf16 %v1860, %v1860
  %v1893 = vpack.c.bf16 %v1861, %v1861
  %v1894 = vpack.c.bf16 %v1862, %v1862
  %v1895 = vpack.c.bf16 %v1863, %v1863
  %v1896 = vpack.c.bf16 %v1864, %v1864
  %v1897 = vpack.c.bf16 %v1865, %v1865
  %v1898 = vpack.c.bf16 %v1866, %v1866
  %v1899 = vpack.c.bf16 %v1867, %v1867
  %v1900 = vpack.c.bf16 %v1868, %v1868
  %v1901 = vpack.c.bf16 %v1869, %v1869
  %v1902 = vpack.c.bf16 %v1870, %v1870
  %v1903 = vpack.c.bf16 %v1871, %v1871
  %v1904 = vpack.c.bf16 %v1872, %v1872
  %v1905 = vpack.c.bf16 %v1873, %v1873
  %v1906 = vpack.c.bf16 %v1874, %v1874
  %v1907 = vpack.c.bf16 %v1875, %v1875
  %v1908 = vpack.c.bf16 %v1876, %v1876
  %v1909 = vpack.c.bf16 %v1877, %v1877
  %v1910 = vpack.c.bf16 %v1878, %v1878
  %v1911 = vpack.c.bf16 %v1879, %v1879
  %v1912 = vpack.c.bf16 %v1880, %v1880
  %v1913 = vpack.c.bf16 %v1881, %v1881
  %v1914 = vpack.c.bf16 %v1882, %v1882
  %v1915 = vpack.c.bf16 %v1883, %v1883
  %v1916 = vpack.c.bf16 %v1884, %v1884
  %v1917 = vpack.c.bf16 %v1885, %v1885
  %v1918 = vpack.c.bf16 %v1886, %v1886
  %v1919 = vpack.c.bf16 %v1887, %v1887
  %v1920 = vpack.c.bf16 %v1888, %v1888
  %v1925 = vunpack.c.l.b16 %v1741
  %v1926 = vunpack.c.l.b16 %v1742
  %v1927 = vunpack.c.l.b16 %v1743
  %v1928 = vunpack.c.l.b16 %v1744
  %v1929 = vpack.c.b16 %v1926, %v1925
  %v1930 = vpack.c.b16 %v1928, %v1927
  %v1949 = vunpack.c.l.b16 %v1889
  %v1950 = vunpack.c.l.b16 %v1890
  %v1951 = vunpack.c.l.b16 %v1891
  %v1952 = vunpack.c.l.b16 %v1892
  %v1953 = vunpack.c.l.b16 %v1893
  %v1954 = vunpack.c.l.b16 %v1894
  %v1955 = vunpack.c.l.b16 %v1895
  %v1956 = vunpack.c.l.b16 %v1896
  %v1957 = vunpack.c.l.b16 %v1897
  %v1958 = vunpack.c.l.b16 %v1898
  %v1959 = vunpack.c.l.b16 %v1899
  %v1960 = vunpack.c.l.b16 %v1900
  %v1961 = vunpack.c.l.b16 %v1901
  %v1962 = vunpack.c.l.b16 %v1902
  %v1963 = vunpack.c.l.b16 %v1903
  %v1964 = vunpack.c.l.b16 %v1904
  %v1965 = vpack.c.b16 %v1950, %v1949
  %v1966 = vpack.c.b16 %v1952, %v1951
  %v1967 = vpack.c.b16 %v1954, %v1953
  %v1968 = vpack.c.b16 %v1956, %v1955
  %v1969 = vpack.c.b16 %v1958, %v1957
  %v1970 = vpack.c.b16 %v1960, %v1959
  %v1971 = vpack.c.b16 %v1962, %v1961
  %v1972 = vpack.c.b16 %v1964, %v1963
  %1973 = vrot.lane.b32.xlu0 %v1965, 64
  %v1974 = vpop.permute.xlu0 %1973
  %1975 = vrot.lane.b32.xlu0 %v1966, 64
  %v1976 = vpop.permute.xlu0 %1975
  %1977 = vrot.lane.b32.xlu0 %v1967, 64
  %v1978 = vpop.permute.xlu0 %1977
  %1979 = vrot.lane.b32.xlu0 %v1968, 64
  %v1980 = vpop.permute.xlu0 %1979
  %1981 = vrot.lane.b32.xlu0 %v1969, 64
  %v1982 = vpop.permute.xlu0 %1981
  %1983 = vrot.lane.b32.xlu0 %v1970, 64
  %v1984 = vpop.permute.xlu0 %1983
  %1985 = vrot.lane.b32.xlu0 %v1971, 64
  %v1986 = vpop.permute.xlu0 %1985
  %1987 = vrot.lane.b32.xlu0 %v1972, 64
  %v1988 = vpop.permute.xlu0 %1987
  %1997 = vmatpush.bf16.msra.mxu0 %v1988
  %1998 = vmatpush.bf16.msra.mxu0 %v1986
  %1999 = vmatpush.bf16.msra.mxu0 %v1984
  %2000 = vmatpush.bf16.msra.mxu0 %v1982
  %2001 = vmatpush.bf16.msra.mxu0 %v1980
  %2002 = vmatpush.bf16.msra.mxu0 %v1978
  %2003 = vmatpush.bf16.msra.mxu0 %v1976
  %2004 = vmatpush.bf16.msra.mxu0 %v1974
  %2005 = vmatmul.bf16.gmra.mxu0 %v1929
  %v2006 = vpop.f32.mrf.mxu0
  %v2007 = vadd.f32 0.0, %v2006
  %v2008 = vpop.f32.mrf.mxu0
  %v2009 = vadd.f32 0.0, %v2008
  %2010 = vmatmul.bf16.gmra.mxu0 %v1930
  %v2011 = vpop.f32.mrf.mxu0
  %v2012 = vadd.f32 0.0, %v2011
  %v2013 = vpop.f32.mrf.mxu0
  %v2014 = vadd.f32 0.0, %v2013
  %2015 = vdwg.mxu0
  %v2020 = vunpack.c.l.b16 %v1745
  %v2021 = vunpack.c.l.b16 %v1746
  %v2022 = vunpack.c.l.b16 %v1747
  %v2023 = vunpack.c.l.b16 %v1748
  %v2024 = vpack.c.b16 %v2021, %v2020
  %v2025 = vpack.c.b16 %v2023, %v2022
  %v2044 = vunpack.c.l.b16 %v1905
  %v2045 = vunpack.c.l.b16 %v1906
  %v2046 = vunpack.c.l.b16 %v1907
  %v2047 = vunpack.c.l.b16 %v1908
  %v2048 = vunpack.c.l.b16 %v1909
  %v2049 = vunpack.c.l.b16 %v1910
  %v2050 = vunpack.c.l.b16 %v1911
  %v2051 = vunpack.c.l.b16 %v1912
  %v2052 = vunpack.c.l.b16 %v1913
  %v2053 = vunpack.c.l.b16 %v1914
  %v2054 = vunpack.c.l.b16 %v1915
  %v2055 = vunpack.c.l.b16 %v1916
  %v2056 = vunpack.c.l.b16 %v1917
  %v2057 = vunpack.c.l.b16 %v1918
  %v2058 = vunpack.c.l.b16 %v1919
  %v2059 = vunpack.c.l.b16 %v1920
  %v2060 = vpack.c.b16 %v2045, %v2044
  %v2061 = vpack.c.b16 %v2047, %v2046
  %v2062 = vpack.c.b16 %v2049, %v2048
  %v2063 = vpack.c.b16 %v2051, %v2050
  %v2064 = vpack.c.b16 %v2053, %v2052
  %v2065 = vpack.c.b16 %v2055, %v2054
  %v2066 = vpack.c.b16 %v2057, %v2056
  %v2067 = vpack.c.b16 %v2059, %v2058
  %2068 = vrot.lane.b32.xlu0 %v2060, 64
  %v2069 = vpop.permute.xlu0 %2068
  %2070 = vrot.lane.b32.xlu0 %v2061, 64
  %v2071 = vpop.permute.xlu0 %2070
  %2072 = vrot.lane.b32.xlu0 %v2062, 64
  %v2073 = vpop.permute.xlu0 %2072
  %2074 = vrot.lane.b32.xlu0 %v2063, 64
  %v2075 = vpop.permute.xlu0 %2074
  %2076 = vrot.lane.b32.xlu0 %v2064, 64
  %v2077 = vpop.permute.xlu0 %2076
  %2078 = vrot.lane.b32.xlu0 %v2065, 64
  %v2079 = vpop.permute.xlu0 %2078
  %2080 = vrot.lane.b32.xlu0 %v2066, 64
  %v2081 = vpop.permute.xlu0 %2080
  %2082 = vrot.lane.b32.xlu0 %v2067, 64
  %v2083 = vpop.permute.xlu0 %2082
  %2092 = vmatpush.bf16.msra.mxu0 %v2083
  %2093 = vmatpush.bf16.msra.mxu0 %v2081
  %2094 = vmatpush.bf16.msra.mxu0 %v2079
  %2095 = vmatpush.bf16.msra.mxu0 %v2077
  %2096 = vmatpush.bf16.msra.mxu0 %v2075
  %2097 = vmatpush.bf16.msra.mxu0 %v2073
  %2098 = vmatpush.bf16.msra.mxu0 %v2071
  %2099 = vmatpush.bf16.msra.mxu0 %v2069
  %2100 = vmatmul.bf16.gmra.mxu0 %v2024
  %v2101 = vpop.f32.mrf.mxu0
  %v2102 = vadd.f32 0.0, %v2101
  %v2103 = vpop.f32.mrf.mxu0
  %v2104 = vadd.f32 0.0, %v2103
  %2105 = vmatmul.bf16.gmra.mxu0 %v2025
  %v2106 = vpop.f32.mrf.mxu0
  %v2107 = vadd.f32 0.0, %v2106
  %v2108 = vpop.f32.mrf.mxu0
  %v2109 = vadd.f32 0.0, %v2108
  %2110 = vdwg.mxu0
  %v2111 = vpack.c.bf16 %v2009, %v2007
  %v2112 = vpack.c.bf16 %v2014, %v2012
  %v2113 = vpack.c.bf16 %v2104, %v2102
  %v2114 = vpack.c.bf16 %v2109, %v2107
  %v2115 = vld [vmem:[%s4] sm:$0xf]
  %v2116 = vld [vmem:[%s4 + $0x4] sm:$0xf]
  %v2117 = vld [vmem:[%s4 + $0x8] sm:$0xf]
  %v2118 = vld [vmem:[%s4 + $0xc] sm:$0xf]
  %v2119 = vld [vmem:[%s5] sm:$0x1]
  %v2121 = vperm.slane %v2119, 0
  %v2127 = vunpack.c.l.b16 %v2115
  %v2128 = vunpack.c.l.b16 %v2116
  %v2129 = vunpack.c.l.b16 %v2117
  %v2130 = vunpack.c.l.b16 %v2118
  %v2131 = vpack.c.b16 %v2128, %v2127
  %v2132 = vpack.c.b16 %v2130, %v2129
  %v2136 = vsel %vm112, %v2111, 0
  %v2139 = vsel %vm112, %v2112, 0
  %v2142 = vsel %vm112, %v2113, 0
  %v2145 = vsel %vm112, %v2114, 0
  %2147 = vmatpush.bf16.msra.mxu0 0
  %2148 = vmatpush.bf16.msra.mxu0 0
  %2149 = vmatpush.bf16.msra.mxu0 0
  %2150 = vmatpush.bf16.msra.mxu0 0
  %2151 = vmatpush.bf16.msra.mxu0 0
  %2152 = vmatpush.bf16.msra.mxu0 0
  %2153 = vmatpush.bf16.msra.mxu0 %v2132
  %2154 = vmatpush.bf16.msra.mxu0 %v2131
  %2155 = vmatmul.bf16.gmra.mxu0 %v2136
  %v2156 = vpop.f32.mrf.mxu0
  %v2157 = vadd.f32 %v2121, %v2156
  %v2158 = vpop.f32.mrf.mxu0
  %v2159 = vadd.f32 %v2121, %v2158
  %2160 = vmatmul.bf16.gmra.mxu0 %v2139
  %v2161 = vpop.f32.mrf.mxu0
  %v2162 = vadd.f32 %v2121, %v2161
  %v2163 = vpop.f32.mrf.mxu0
  %v2164 = vadd.f32 %v2121, %v2163
  %2165 = vmatmul.bf16.gmra.mxu0 %v2142
  %v2166 = vpop.f32.mrf.mxu0
  %v2167 = vadd.f32 %v2121, %v2166
  %v2168 = vpop.f32.mrf.mxu0
  %v2169 = vadd.f32 %v2121, %v2168
  %2170 = vmatmul.bf16.gmra.mxu0 %v2145
  %v2171 = vpop.f32.mrf.mxu0
  %v2172 = vadd.f32 %v2121, %v2171
  %v2173 = vpop.f32.mrf.mxu0
  %v2174 = vadd.f32 %v2121, %v2173
  %2175 = vdwg.mxu0
  %v2177 = vsel %vm112, %v1603, 0
  %v2180 = vsel %vm112, %v1604, 0
  %v2183 = vsel %vm112, %v1605, 0
  %v2186 = vsel %vm112, %v1606, 0
  %v2189 = vsel %vm112, %v1611, 0
  %v2192 = vsel %vm112, %v1612, 0
  %v2195 = vsel %vm112, %v1613, 0
  %v2198 = vsel %vm112, %v1614, 0
  %2200 = vmatpush.xpose.msra.mxu0 0.0
  %2201 = vmatpush.xpose.msra.mxu0 0.0
  %2202 = vmatpush.xpose.msra.mxu0 0.0
  %2203 = vmatpush.xpose.msra.mxu0 0.0
  %2204 = vmatpush.xpose.msra.mxu0 0.0
  %2205 = vmatpush.xpose.msra.mxu0 0.0
  %2206 = vmatpush.xpose.msra.mxu0 0.0
  %2207 = vmatpush.xpose.msra.mxu0 0.0
  %2208 = vmatpush.xpose.msra.mxu0 0.0
  %2209 = vmatpush.xpose.msra.mxu0 0.0
  %2210 = vmatpush.xpose.msra.mxu0 0.0
  %2211 = vmatpush.xpose.msra.mxu0 0.0
  %2212 = vmatpush.xpose.msra.mxu0 %v2198
  %2213 = vmatpush.xpose.msra.mxu0 %v2195
  %2214 = vmatpush.xpose.msra.mxu0 %v2192
  %2215 = vmatpush.xpose.msra.mxu0 %v2189
  %2216 = vmatmul.f32.gmra.mxu0 %v2177
  %v2217 = vpop.f32.mrf.mxu0
  %v2218 = vadd.f32 0.0, %v2217
  %2219 = vmatmul.f32.gmra.mxu0 %v2180
  %v2220 = vpop.f32.mrf.mxu0
  %v2221 = vadd.f32 0.0, %v2220
  %2222 = vmatmul.f32.gmra.mxu0 %v2183
  %v2223 = vpop.f32.mrf.mxu0
  %v2224 = vadd.f32 0.0, %v2223
  %2225 = vmatmul.f32.gmra.mxu0 %v2186
  %v2226 = vpop.f32.mrf.mxu0
  %v2227 = vadd.f32 0.0, %v2226
  %2228 = vdwg.mxu0
  %v2230 = vsel %vm112, %v1607, 0
  %v2233 = vsel %vm112, %v1608, 0
  %v2236 = vsel %vm112, %v1609, 0
  %v2239 = vsel %vm112, %v1610, 0
  %v2242 = vsel %vm112, %v1615, 0
  %v2245 = vsel %vm112, %v1616, 0
  %v2248 = vsel %vm112, %v1617, 0
  %v2251 = vsel %vm112, %v1618, 0
  %2253 = vmatpush.xpose.msra.mxu0 0.0
  %2254 = vmatpush.xpose.msra.mxu0 0.0
  %2255 = vmatpush.xpose.msra.mxu0 0.0
  %2256 = vmatpush.xpose.msra.mxu0 0.0
  %2257 = vmatpush.xpose.msra.mxu0 0.0
  %2258 = vmatpush.xpose.msra.mxu0 0.0
  %2259 = vmatpush.xpose.msra.mxu0 0.0
  %2260 = vmatpush.xpose.msra.mxu0 0.0
  %2261 = vmatpush.xpose.msra.mxu0 0.0
  %2262 = vmatpush.xpose.msra.mxu0 0.0
  %2263 = vmatpush.xpose.msra.mxu0 0.0
  %2264 = vmatpush.xpose.msra.mxu0 0.0
  %2265 = vmatpush.xpose.msra.mxu0 %v2251
  %2266 = vmatpush.xpose.msra.mxu0 %v2248
  %2267 = vmatpush.xpose.msra.mxu0 %v2245
  %2268 = vmatpush.xpose.msra.mxu0 %v2242
  %2269 = vmatmul.f32.gmra.mxu0 %v2230
  %v2270 = vpop.f32.mrf.mxu0
  %v2271 = vadd.f32 0.0, %v2270
  %2272 = vmatmul.f32.gmra.mxu0 %v2233
  %v2273 = vpop.f32.mrf.mxu0
  %v2274 = vadd.f32 0.0, %v2273
  %2275 = vmatmul.f32.gmra.mxu0 %v2236
  %v2276 = vpop.f32.mrf.mxu0
  %v2277 = vadd.f32 0.0, %v2276
  %2278 = vmatmul.f32.gmra.mxu0 %v2239
  %v2279 = vpop.f32.mrf.mxu0
  %v2280 = vadd.f32 0.0, %v2279
  %2281 = vdwg.mxu0
  %v2283 = vsel %vm112, %v2218, 0
  %v2286 = vsel %vm112, %v2221, 0
  %v2289 = vsel %vm112, %v2224, 0
  %v2292 = vsel %vm112, %v2227, 0
  %2294 = vmatpush.msra.mxu0 0.0
  %2295 = vmatpush.msra.mxu0 0.0
  %2296 = vmatpush.msra.mxu0 0.0
  %2297 = vmatpush.msra.mxu0 0.0
  %2298 = vmatpush.msra.mxu0 0.0
  %2299 = vmatpush.msra.mxu0 0.0
  %2300 = vmatpush.msra.mxu0 0.0
  %2301 = vmatpush.msra.mxu0 0.0
  %2302 = vmatpush.msra.mxu0 0.0
  %2303 = vmatpush.msra.mxu0 0.0
  %2304 = vmatpush.msra.mxu0 0.0
  %2305 = vmatpush.msra.mxu0 0.0
  %2306 = vmatpush.msra.mxu0 %v2164
  %2307 = vmatpush.msra.mxu0 %v2162
  %2308 = vmatpush.msra.mxu0 %v2159
  %2309 = vmatpush.msra.mxu0 %v2157
  %2310 = vmatmul.f32.gmra.mxu0 %v2283
  %v2311 = vpop.f32.mrf.mxu0
  %v2312 = vadd.f32 0.0, %v2311
  %2313 = vmatmul.f32.gmra.mxu0 %v2286
  %v2314 = vpop.f32.mrf.mxu0
  %v2315 = vadd.f32 0.0, %v2314
  %2316 = vmatmul.f32.gmra.mxu0 %v2289
  %v2317 = vpop.f32.mrf.mxu0
  %v2318 = vadd.f32 0.0, %v2317
  %2319 = vmatmul.f32.gmra.mxu0 %v2292
  %v2320 = vpop.f32.mrf.mxu0
  %v2321 = vadd.f32 0.0, %v2320
  %2322 = vdwg.mxu0
  %v2324 = vsel %vm112, %v2271, 0
  %v2327 = vsel %vm112, %v2274, 0
  %v2330 = vsel %vm112, %v2277, 0
  %v2333 = vsel %vm112, %v2280, 0
  %2335 = vmatpush.msra.mxu0 0.0
  %2336 = vmatpush.msra.mxu0 0.0
  %2337 = vmatpush.msra.mxu0 0.0
  %2338 = vmatpush.msra.mxu0 0.0
  %2339 = vmatpush.msra.mxu0 0.0
  %2340 = vmatpush.msra.mxu0 0.0
  %2341 = vmatpush.msra.mxu0 0.0
  %2342 = vmatpush.msra.mxu0 0.0
  %2343 = vmatpush.msra.mxu0 0.0
  %2344 = vmatpush.msra.mxu0 0.0
  %2345 = vmatpush.msra.mxu0 0.0
  %2346 = vmatpush.msra.mxu0 0.0
  %2347 = vmatpush.msra.mxu0 %v2174
  %2348 = vmatpush.msra.mxu0 %v2172
  %2349 = vmatpush.msra.mxu0 %v2169
  %2350 = vmatpush.msra.mxu0 %v2167
  %2351 = vmatmul.f32.gmra.mxu0 %v2324
  %v2352 = vpop.f32.mrf.mxu0
  %v2353 = vadd.f32 0.0, %v2352
  %2354 = vmatmul.f32.gmra.mxu0 %v2327
  %v2355 = vpop.f32.mrf.mxu0
  %v2356 = vadd.f32 0.0, %v2355
  %2357 = vmatmul.f32.gmra.mxu0 %v2330
  %v2358 = vpop.f32.mrf.mxu0
  %v2359 = vadd.f32 0.0, %v2358
  %2360 = vmatmul.f32.gmra.mxu0 %v2333
  %v2361 = vpop.f32.mrf.mxu0
  %v2362 = vadd.f32 0.0, %v2361
  %2363 = vdwg.mxu0
  %v2364 = vpack.c.bf16 %v2315, %v2312
  %v2365 = vpack.c.bf16 %v2321, %v2318
  %v2366 = vpack.c.bf16 %v2356, %v2353
  %v2367 = vpack.c.bf16 %v2362, %v2359
  %v2368 = vld [vmem:[%s6] sm:$0xf]
  %v2369 = vld [vmem:[%s6 + $0x4] sm:$0xf]
  %v2370 = vld [vmem:[%s6 + $0x8] sm:$0xf]
  %v2371 = vld [vmem:[%s6 + $0xc] sm:$0xf]
  %v2372 = vld [vmem:[%s7] sm:$0x1]
  %v2374 = vperm.slane %v2372, 0
  %v2380 = vunpack.c.l.b16 %v2368
  %v2381 = vunpack.c.l.b16 %v2369
  %v2382 = vunpack.c.l.b16 %v2370
  %v2383 = vunpack.c.l.b16 %v2371
  %v2384 = vpack.c.b16 %v2381, %v2380
  %v2385 = vpack.c.b16 %v2383, %v2382
  %v2389 = vsel %vm112, %v2364, 0
  %v2392 = vsel %vm112, %v2365, 0
  %v2395 = vsel %vm112, %v2366, 0
  %v2398 = vsel %vm112, %v2367, 0
  %2400 = vmatpush.bf16.msra.mxu0 0
  %2401 = vmatpush.bf16.msra.mxu0 0
  %2402 = vmatpush.bf16.msra.mxu0 0
  %2403 = vmatpush.bf16.msra.mxu0 0
  %2404 = vmatpush.bf16.msra.mxu0 0
  %2405 = vmatpush.bf16.msra.mxu0 0
  %2406 = vmatpush.bf16.msra.mxu0 %v2385
  %2407 = vmatpush.bf16.msra.mxu0 %v2384
  %2408 = vmatmul.bf16.gmra.mxu0 %v2389
  %v2409 = vpop.f32.mrf.mxu0
  %v2410 = vadd.f32 %v2374, %v2409
  %v2411 = vpop.f32.mrf.mxu0
  %v2412 = vadd.f32 %v2374, %v2411
  %2413 = vmatmul.bf16.gmra.mxu0 %v2392
  %v2414 = vpop.f32.mrf.mxu0
  %v2415 = vadd.f32 %v2374, %v2414
  %v2416 = vpop.f32.mrf.mxu0
  %v2417 = vadd.f32 %v2374, %v2416
  %2418 = vmatmul.bf16.gmra.mxu0 %v2395
  %v2419 = vpop.f32.mrf.mxu0
  %v2420 = vadd.f32 %v2374, %v2419
  %v2421 = vpop.f32.mrf.mxu0
  %v2422 = vadd.f32 %v2374, %v2421
  %2423 = vmatmul.bf16.gmra.mxu0 %v2398
  %v2424 = vpop.f32.mrf.mxu0
  %v2425 = vadd.f32 %v2374, %v2424
  %v2426 = vpop.f32.mrf.mxu0
  %v2427 = vadd.f32 %v2374, %v2426
  %2428 = vdwg.mxu0
  %v2429 = vmax.f32 %v2410, 0.0
  %v2430 = vmax.f32 %v2412, 0.0
  %v2431 = vmax.f32 %v2415, 0.0
  %v2432 = vmax.f32 %v2417, 0.0
  %v2433 = vmax.f32 %v2420, 0.0
  %v2434 = vmax.f32 %v2422, 0.0
  %v2435 = vmax.f32 %v2425, 0.0
  %v2436 = vmax.f32 %v2427, 0.0
  %v2437 = vpack.c.bf16 %v2430, %v2429
  %v2438 = vpack.c.bf16 %v2432, %v2431
  %v2439 = vpack.c.bf16 %v2434, %v2433
  %v2440 = vpack.c.bf16 %v2436, %v2435
  %v2441 = vld [vmem:[%s8] sm:$0xf]
  %v2442 = vld [vmem:[%s8 + $0x4] sm:$0xf]
  %v2443 = vld [vmem:[%s8 + $0x8] sm:$0xf]
  %v2444 = vld [vmem:[%s8 + $0xc] sm:$0xf]
  %v2445 = vld [vmem:[%s8 + $0x10] sm:$0xf]
  %v2446 = vld [vmem:[%s8 + $0x14] sm:$0xf]
  %v2447 = vld [vmem:[%s8 + $0x18] sm:$0xf]
  %v2448 = vld [vmem:[%s8 + $0x1c] sm:$0xf]
  %v2449 = vld [vmem:[%s9] sm:$0x1]
  %v2451 = vperm.slane %v2449, 0
  %v2461 = vunpack.c.l.b16 %v2441
  %v2462 = vunpack.c.l.b16 %v2442
  %v2463 = vunpack.c.l.b16 %v2443
  %v2464 = vunpack.c.l.b16 %v2444
  %v2465 = vunpack.c.l.b16 %v2445
  %v2466 = vunpack.c.l.b16 %v2446
  %v2467 = vunpack.c.l.b16 %v2447
  %v2468 = vunpack.c.l.b16 %v2448
  %v2469 = vpack.c.b16 %v2462, %v2461
  %v2470 = vpack.c.b16 %v2464, %v2463
  %v2471 = vpack.c.b16 %v2466, %v2465
  %v2472 = vpack.c.b16 %v2468, %v2467
  %v2478 = vsel %vm1723, %v2437, 0
  %v2481 = vsel %vm1723, %v2438, 0
  %v2484 = vsel %vm1723, %v2439, 0
  %v2487 = vsel %vm1723, %v2440, 0
  %2489 = vmatpush.bf16.msra.mxu0 0
  %2490 = vmatpush.bf16.msra.mxu0 0
  %2491 = vmatpush.bf16.msra.mxu0 0
  %2492 = vmatpush.bf16.msra.mxu0 0
  %2493 = vmatpush.bf16.msra.mxu0 %v2472
  %2494 = vmatpush.bf16.msra.mxu0 %v2471
  %2495 = vmatpush.bf16.msra.mxu0 %v2470
  %2496 = vmatpush.bf16.msra.mxu0 %v2469
  %2497 = vmatmul.bf16.gmra.mxu0 %v2478
  %v2498 = vpop.f32.mrf.mxu0
  %v2499 = vadd.f32 %v2451, %v2498
  %v2500 = vpop.f32.mrf.mxu0
  %v2501 = vadd.f32 %v2451, %v2500
  %2502 = vmatmul.bf16.gmra.mxu0 %v2481
  %v2503 = vpop.f32.mrf.mxu0
  %v2504 = vadd.f32 %v2451, %v2503
  %v2505 = vpop.f32.mrf.mxu0
  %v2506 = vadd.f32 %v2451, %v2505
  %2507 = vmatmul.bf16.gmra.mxu0 %v2484
  %v2508 = vpop.f32.mrf.mxu0
  %v2509 = vadd.f32 %v2451, %v2508
  %v2510 = vpop.f32.mrf.mxu0
  %v2511 = vadd.f32 %v2451, %v2510
  %2512 = vmatmul.bf16.gmra.mxu0 %v2487
  %v2513 = vpop.f32.mrf.mxu0
  %v2514 = vadd.f32 %v2451, %v2513
  %v2515 = vpop.f32.mrf.mxu0
  %v2516 = vadd.f32 %v2451, %v2515
  %2517 = vdwg.mxu0
  %2518 = vst [vmem:[%s10] sm:$0xff] %v2499
  %2519 = vst [vmem:[%s10 + $0x8] sm:$0xff] %v2501
  %2520 = vst [vmem:[%s10 + $0x10] sm:$0xff] %v2504
  %2521 = vst [vmem:[%s10 + $0x18] sm:$0xff] %v2506
  %2522 = vst [vmem:[%s10 + $0x20] sm:$0xff] %v2509
  %2523 = vst [vmem:[%s10 + $0x28] sm:$0xff] %v2511
  %2524 = vst [vmem:[%s10 + $0x30] sm:$0xff] %v2514
  %2525 = vst [vmem:[%s10 + $0x38] sm:$0xff] %v2516
  // Predicated region
  $region42: #{encoder_block_forward.1} parent=0 // pred_check
    _
  $region43: #{encoder_block_forward.1} parent=0 // pred_check_branch
    %2527 = sbr.rel (0) target = $region45
  $region44: #{encoder_block_forward.1} parent=0 // pred_region
    _
  $region45: #{encoder_block_forward.1} parent=0 // pred_fallthru
    _
  // Predicated region
  $region46: #{encoder_block_forward.1} parent=0 // pred_check
    _
  $region47: #{encoder_block_forward.1} parent=0 // pred_check_branch
    %2529 = sbr.rel (0) target = $region49
  $region48: #{encoder_block_forward.1} parent=0 // pred_region
    _
  $region49: #{encoder_block_forward.1} parent=0 // pred_fallthru
    _

</llo_original>
